<compile_context>
chip_gen: v7x
topology: tpu7x:2x2x1
jax: 0.10.0
libtpu: 0.0.40
codegen_flags: <defaults>
</compile_context>

<pallas_src>
import functools

import jax
import jax.numpy as jnp
from jax.experimental import pallas as pl
from jax.experimental.pallas import tpu as pltpu

K = 7        # self.krnl_size
PAD = 3      # conv padding
LANE = 128
CKK = 64     # 7*7 = 49 taps zero-padded to 64


def _round_up(n, m):
    return (n + m - 1) // m * m


def _single_core_chip():
    """True for TPU generations with one TensorCore per chip (v5e / v6e)."""
    try:
        kind = jax.devices()[0].device_kind.lower()
    except Exception:
        return False
    return any(tag in kind for tag in ("lite", "v5e", "v6e"))


def _zpzp_kernel(xpf_ref, w1_ref, w2_ref, scale_ref,       # inputs
                 lat_ref, out_ref,                          # outputs
                 patch_ref, latp_ref, y_ref,                # VMEM scratch
                 *, b_blk, hwp, wp, loff, llen):
    """Fused conv1 -> /mask -> conv2 -> /mask for b_blk batch elements.

    xpf_ref   : (B, XLEN)        f32  zero-padded inputs, flattened over (Hp*Wp), zero tail
    w1_ref    : (32, 64)         bf16 conv1 weights, taps zero-padded 49 -> 64
    w2_ref    : (64, 32)         bf16 conv2 weights [tap, in_channel], rows 49..63 zero
    scale_ref : (1, B*hwp)       f32  1/mask on valid columns, 0 on dead columns
    lat_ref   : (B, 32, hwp)     f32  latent (wide layout)
    out_ref   : (B, 1, hwp)      f32  final output (wide layout)
    patch_ref : (64, B*hwp)      f32  conv1 im2col scratch
    latp_ref  : (32, B*llen)     bf16 zero-padded latent (interior lane-aligned)
    y_ref     : (64, B*llen)     f32  conv2 per-tap partial sums  Y = w2 @ latp
    """
    taps = [kh * wp + kw for kh in range(K) for kw in range(K)]
    nkk = len(taps)                 # 49
    ckk = patch_ref.shape[0]        # 64
    z0 = (nkk // 8) * 8             # 48: aligned start of the zero-only rows

    xv = xpf_ref[...]               # (B, XLEN) f32

    # ---- conv1 im2col: 49 shifted contiguous row slices per batch element.
    # Rows z0..ckk-1 multiply zero-padded w1 columns but must be finite
    # (stale VMEM could be NaN); re-zero the aligned [48:64) block each step.
    patch_ref[z0:ckk, :] = jnp.zeros((ckk - z0, b_blk * hwp), patch_ref.dtype)
    for i in range(b_blk):
        xrow = xv[i:i + 1, :]                                  # (1, XLEN)
        for t, off in enumerate(taps):
            patch_ref[t:t + 1, i * hwp:(i + 1) * hwp] = xrow[:, off:off + hwp]

    scale = scale_ref[...]                                     # (1, B*hwp) f32
    latent = jnp.dot(w1_ref[...], patch_ref[...].astype(jnp.bfloat16),
                     preferred_element_type=jnp.float32) * scale  # (32, B*hwp)

    # ---- write latent out + build the zero-padded bf16 latent for conv2.
    start = loff + PAD * wp + PAD            # lane-aligned interior offset
    nmid = latp_ref.shape[0]                 # 32
    lat_bf = latent.astype(latp_ref.dtype)
    for i in range(b_blk):
        lat_ref[i] = latent[:, i * hwp:(i + 1) * hwp]
        base = i * llen
        # pad borders must be zero (they ARE the conv zero padding); aligned stores.
        latp_ref[:, base:base + start] = jnp.zeros((nmid, start), latp_ref.dtype)
        latp_ref[:, base + start + hwp:base + llen] = jnp.zeros(
            (nmid, llen - start - hwp), latp_ref.dtype)
        latp_ref[:, base + start:base + start + hwp] = lat_bf[:, i * hwp:(i + 1) * hwp]

    # ---- conv2: ONE (64,32)@(32,B*llen) matmul, then 49 shifted VPU adds.
    y_ref[...] = jnp.dot(w2_ref[...], latp_ref[...],
                         preferred_element_type=jnp.float32)   # (64, B*llen)
    for i in range(b_blk):
        base = i * llen + loff
        acc = None
        for s in range(0, nkk, 8):                             # chunked tree-sum
            terms = [y_ref[t:t + 1, base + taps[t]:base + taps[t] + hwp]
                     for t in range(s, min(s + 8, nkk))]
            while len(terms) > 1:
                nxt = [terms[j] + terms[j + 1] for j in range(0, len(terms) - 1, 2)]
                if len(terms) % 2:
                    nxt.append(terms[-1])
                terms = nxt
            acc = terms[0] if acc is None else acc + terms[0]
        out_ref[i] = acc * scale[:, i * hwp:(i + 1) * hwp]      # conv2 / mask


def zpzp_forward(x, params):
    """Mirror of ZPZP.forward: returns (out, {'latent': latent})."""
    N, C_in, H, W = x.shape
    assert C_in == 1

    # Padded row width: at least W + 2*PAD; rounded up a little (<= +8) so
    # hwp = H*WP is a multiple of 128 (lane-aligned rows & unmasked stores).
    WP = W + 2 * PAD
    for cand in range(WP, WP + 9):
        if (H * cand) % LANE == 0:
            WP = cand
            break
    HP = H + 2 * PAD
    HWP = H * WP                                  # "wide" spatial layout length
    need = (K - 1) * WP + (K - 1) + HWP           # max slice end over all taps
    XLEN = _round_up(need, LANE)
    LOFF = (-(PAD * WP + PAD)) % LANE             # lane-align the latent interior
    LLEN = _round_up(LOFF + need, LANE)

    # Batch folding: single-TC chips pay per-grid-step overhead twice for
    # microsecond-scale work, so fold all images into one step there; multi-TC
    # chips (v7x/v5p/v4) keep one image per step so "parallel" shards the grid.
    B = N if (_single_core_chip() and N <= 8) else 1
    G = N // B

    # weight_norm with weight_g == 1: each output filter scaled to unit L2 norm.
    def wnorm(w):
        return w / jnp.sqrt(jnp.sum(jnp.square(w), axis=(1, 2, 3), keepdims=True))

    w1 = wnorm(params["pconv"].astype(jnp.float32))     # (32, 1, 7, 7)
    w2 = wnorm(params["pconv1"].astype(jnp.float32))    # (1, 32, 7, 7)
    C_mid = w1.shape[0]

    w1p = jnp.zeros((C_mid, CKK), jnp.float32)
    w1p = w1p.at[:, :K * K].set(w1.reshape(C_mid, K * K)).astype(jnp.bfloat16)
    w2p = jnp.zeros((CKK, C_mid), jnp.float32)
    w2p = w2p.at[:K * K, :].set(
        jnp.transpose(w2[0], (1, 2, 0)).reshape(K * K, C_mid)).astype(jnp.bfloat16)

    # Zero-padded input, flattened over (Hp, Wp) rows of width WP, zero tail.
    xp = jnp.pad(x[:, 0].astype(jnp.float32),
                 ((0, 0), (PAD, PAD), (PAD, WP - W - PAD)))          # (N, HP, WP)
    xpf = jnp.zeros((N, XLEN), jnp.float32)
    xpf = xpf.at[:, :HP * WP].set(xp.reshape(N, HP * WP)).reshape(G, B, XLEN)

    # Partial-conv mask: AvgPool2d(7, stride=1) over zero-padded ones.
    ones_p = jnp.pad(jnp.ones((H, W), jnp.float32), PAD)
    mask = jax.lax.reduce_window(ones_p, 0.0, jax.lax.add,
                                 (K, K), (1, 1), "VALID") / float(K * K)   # (H, W)
    scale = jnp.pad(1.0 / mask, ((0, 0), (0, WP - W))).reshape(1, HWP)
    scale = jnp.tile(scale, (1, B))                                        # (1, B*HWP)

    kernel = functools.partial(_zpzp_kernel, b_blk=B, hwp=HWP, wp=WP,
                               loff=LOFF, llen=LLEN)
    # NOTE(scaling): scratch + output blocks grow linearly with H*W.  At 16x16
    # total VMEM use is < 1 MiB; if H,W grow past ~256, add a row-block grid
    # axis (same structure) and/or raise vmem_limit_bytes.
    lat_wide, out_wide = pl.pallas_call(
        kernel,
        out_shape=(jax.ShapeDtypeStruct((G, B, C_mid, HWP), jnp.float32),
                   jax.ShapeDtypeStruct((G, B, 1, HWP), jnp.float32)),
        grid_spec=pltpu.PrefetchScalarGridSpec(
            num_scalar_prefetch=0,
            grid=(G,),
            in_specs=[
                pl.BlockSpec((None, B, XLEN), lambda g: (g, 0, 0)),     # inputs
                pl.BlockSpec((C_mid, CKK), lambda g: (0, 0)),           # w1 (resident)
                pl.BlockSpec((CKK, C_mid), lambda g: (0, 0)),           # w2 (resident)
                pl.BlockSpec((1, B * HWP), lambda g: (0, 0)),           # 1/mask (resident)
            ],
            out_specs=[
                pl.BlockSpec((None, B, C_mid, HWP), lambda g: (g, 0, 0, 0)),
                pl.BlockSpec((None, B, 1, HWP), lambda g: (g, 0, 0, 0)),
            ],
            scratch_shapes=[
                pltpu.VMEM((CKK, B * HWP), jnp.float32),     # conv1 im2col patch
                pltpu.VMEM((C_mid, B * LLEN), jnp.bfloat16), # zero-padded latent
                pltpu.VMEM((CKK, B * LLEN), jnp.float32),    # conv2 per-tap partials
            ],
        ),
        compiler_params=pltpu.CompilerParams(
            dimension_semantics=("parallel",)),
    )(xpf, w1p, w2p, scale)

    # Drop the WP-W dead columns of the wide layout (tiny XLA slice).
    latent = lat_wide.reshape(N, C_mid, H, WP)[:, :, :, :W]
    out = out_wide.reshape(N, 1, H, WP)[:, :, :, :W]
    return out, {"latent": latent}


def ref_forward(x, params):
    """Plain-JAX reference of ZPZP.forward (f32, highest precision)."""
    def wn(w):
        return w / jnp.sqrt(jnp.sum(jnp.square(w), axis=(1, 2, 3), keepdims=True))

    w1, w2 = wn(params["pconv"]), wn(params["pconv1"])

    def conv(a, w):
        return jax.lax.conv_general_dilated(
            a, w, (1, 1), [(PAD, PAD), (PAD, PAD)],
            dimension_numbers=("NCHW", "OIHW", "NCHW"),
            precision=jax.lax.Precision.HIGHEST)

    n, _, h, w_ = x.shape
    ones_p = jnp.pad(jnp.ones((n, 1, h, w_), jnp.float32),
                     ((0, 0), (0, 0), (PAD, PAD), (PAD, PAD)))
    mask = jax.lax.reduce_window(ones_p, 0.0, jax.lax.add,
                                 (1, 1, K, K), (1, 1, 1, 1), "VALID") / (K * K)
    lat = conv(x, w1) / mask
    out = conv(lat, w2) / mask
    return out, lat


if __name__ == "__main__":
    key = jax.random.PRNGKey(0)
    kx, k1, k2 = jax.random.split(key, 3)

    # conv1 requires 1 input channel (module spec)
    N, H, W = 2, 16, 16
    x = jax.random.normal(kx, (N, 1, H, W), jnp.float32)
    params = {
        "pconv": jax.random.normal(k1, (32, 1, K, K), jnp.float32),    # weight_v of pconv
        "pconv1": jax.random.normal(k2, (1, 32, K, K), jnp.float32),   # weight_v of pconv1
    }

    y, feats = jax.jit(zpzp_forward)(x, params)
    jax.block_until_ready((y, feats))

    y_ref, lat_expected = ref_forward(x, params)
    assert y.shape == (N, 1, H, W)
    assert feats["latent"].shape == (N, 32, H, W)
    # bf16 MXU operands -> ~1% relative error budget
    assert jnp.allclose(feats["latent"], lat_expected, rtol=5e-2, atol=5e-2)
    assert jnp.allclose(y, y_ref, rtol=5e-2, atol=5e-2)
    print("KERNEL_OK")
</pallas_src>

<mosaic_0001>
module attributes {stable_mosaic.version = 11 : i64} {
  func.func @_zpzp_kernel(%arg0: i32, %arg1: memref<1x1x640xf32, #tpu.memory_space<vmem>>, %arg2: memref<32x64xbf16, #tpu.memory_space<vmem>>, %arg3: memref<64x32xbf16, #tpu.memory_space<vmem>>, %arg4: memref<1x384xf32, #tpu.memory_space<vmem>>, %arg5: memref<1x1x32x384xf32, #tpu.memory_space<vmem>>, %arg6: memref<1x1x1x384xf32, #tpu.memory_space<vmem>>, %arg7: memref<64x384xf32, #tpu.memory_space<vmem>>, %arg8: memref<32x640xbf16, #tpu.memory_space<vmem>>, %arg9: memref<64x640xf32, #tpu.memory_space<vmem>>) attributes {dimension_semantics = [#tpu.dimension_semantics<parallel>], iteration_bounds = array<i64: 2>, scalar_prefetch = 0 : i64, scratch_operands = 3 : i64, tpu.core_type = #tpu.core_type<tc>, window_params = [{transform_indices = @transform_0, window_bounds = array<i64: 1, 1, 640>}, {pipeline_mode = #tpu.pipeline_mode<synchronous>, transform_indices = @transform_1, window_bounds = array<i64: 32, 64>}, {pipeline_mode = #tpu.pipeline_mode<synchronous>, transform_indices = @transform_2, window_bounds = array<i64: 64, 32>}, {pipeline_mode = #tpu.pipeline_mode<synchronous>, transform_indices = @transform_3, window_bounds = array<i64: 1, 384>}, {transform_indices = @transform_4, window_bounds = array<i64: 1, 1, 32, 384>}, {transform_indices = @transform_5, window_bounds = array<i64: 1, 1, 1, 384>}]} {
    %c0 = arith.constant 0 : index
    %c0_0 = arith.constant 0 : index
    %c0_1 = arith.constant 0 : index
    %0 = vector.load %arg1[%c0, %c0_0, %c0_1] : memref<1x1x640xf32, #tpu.memory_space<vmem>>, vector<1x1x640xf32>
    %1 = vector.shape_cast %0 : vector<1x1x640xf32> to vector<1x640xf32>
    %cst = arith.constant 0.000000e+00 : f32
    %2 = vector.broadcast %cst : f32 to vector<16x384xf32>
    %c48 = arith.constant 48 : index
    %c0_2 = arith.constant 0 : index
    %3 = vector.load %arg7[%c48, %c0_2] : memref<64x384xf32, #tpu.memory_space<vmem>>, vector<16x384xf32>
    tpu.vector_store %arg7[%c48, %c0_2], %2 {strides = array<i32>} : memref<64x384xf32, #tpu.memory_space<vmem>>, vector<16x384xf32>,
    %4 = vector.extract_strided_slice %1 {offsets = [0, 0], sizes = [1, 384], strides = [1, 1]} : vector<1x640xf32> to vector<1x384xf32>
    %c0_3 = arith.constant 0 : index
    %c0_4 = arith.constant 0 : index
    %5 = vector.load %arg7[%c0_3, %c0_4] : memref<64x384xf32, #tpu.memory_space<vmem>>, vector<1x384xf32>
    tpu.vector_store %arg7[%c0_3, %c0_4], %4 {strides = array<i32>} : memref<64x384xf32, #tpu.memory_space<vmem>>, vector<1x384xf32>,
    %6 = vector.extract_strided_slice %1 {offsets = [0, 1], sizes = [1, 384], strides = [1, 1]} : vector<1x640xf32> to vector<1x384xf32>
    %c1 = arith.constant 1 : index
    %c0_5 = arith.constant 0 : index
    %7 = vector.load %arg7[%c1, %c0_5] : memref<64x384xf32, #tpu.memory_space<vmem>>, vector<1x384xf32>
    tpu.vector_store %arg7[%c1, %c0_5], %6 {strides = array<i32>} : memref<64x384xf32, #tpu.memory_space<vmem>>, vector<1x384xf32>,
    %8 = vector.extract_strided_slice %1 {offsets = [0, 2], sizes = [1, 384], strides = [1, 1]} : vector<1x640xf32> to vector<1x384xf32>
    %c2 = arith.constant 2 : index
    %c0_6 = arith.constant 0 : index
    %9 = vector.load %arg7[%c2, %c0_6] : memref<64x384xf32, #tpu.memory_space<vmem>>, vector<1x384xf32>
    tpu.vector_store %arg7[%c2, %c0_6], %8 {strides = array<i32>} : memref<64x384xf32, #tpu.memory_space<vmem>>, vector<1x384xf32>,
    %10 = vector.extract_strided_slice %1 {offsets = [0, 3], sizes = [1, 384], strides = [1, 1]} : vector<1x640xf32> to vector<1x384xf32>
    %c3 = arith.constant 3 : index
    %c0_7 = arith.constant 0 : index
    %11 = vector.load %arg7[%c3, %c0_7] : memref<64x384xf32, #tpu.memory_space<vmem>>, vector<1x384xf32>
    tpu.vector_store %arg7[%c3, %c0_7], %10 {strides = array<i32>} : memref<64x384xf32, #tpu.memory_space<vmem>>, vector<1x384xf32>,
    %12 = vector.extract_strided_slice %1 {offsets = [0, 4], sizes = [1, 384], strides = [1, 1]} : vector<1x640xf32> to vector<1x384xf32>
    %c4 = arith.constant 4 : index
    %c0_8 = arith.constant 0 : index
    %13 = vector.load %arg7[%c4, %c0_8] : memref<64x384xf32, #tpu.memory_space<vmem>>, vector<1x384xf32>
    tpu.vector_store %arg7[%c4, %c0_8], %12 {strides = array<i32>} : memref<64x384xf32, #tpu.memory_space<vmem>>, vector<1x384xf32>,
    %14 = vector.extract_strided_slice %1 {offsets = [0, 5], sizes = [1, 384], strides = [1, 1]} : vector<1x640xf32> to vector<1x384xf32>
    %c5 = arith.constant 5 : index
    %c0_9 = arith.constant 0 : index
    %15 = vector.load %arg7[%c5, %c0_9] : memref<64x384xf32, #tpu.memory_space<vmem>>, vector<1x384xf32>
    tpu.vector_store %arg7[%c5, %c0_9], %14 {strides = array<i32>} : memref<64x384xf32, #tpu.memory_space<vmem>>, vector<1x384xf32>,
    %16 = vector.extract_strided_slice %1 {offsets = [0, 6], sizes = [1, 384], strides = [1, 1]} : vector<1x640xf32> to vector<1x384xf32>
    %c6 = arith.constant 6 : index
    %c0_10 = arith.constant 0 : index
    %17 = vector.load %arg7[%c6, %c0_10] : memref<64x384xf32, #tpu.memory_space<vmem>>, vector<1x384xf32>
    tpu.vector_store %arg7[%c6, %c0_10], %16 {strides = array<i32>} : memref<64x384xf32, #tpu.memory_space<vmem>>, vector<1x384xf32>,
    %18 = vector.extract_strided_slice %1 {offsets = [0, 24], sizes = [1, 384], strides = [1, 1]} : vector<1x640xf32> to vector<1x384xf32>
    %c7 = arith.constant 7 : index
    %c0_11 = arith.constant 0 : index
    %19 = vector.load %arg7[%c7, %c0_11] : memref<64x384xf32, #tpu.memory_space<vmem>>, vector<1x384xf32>
    tpu.vector_store %arg7[%c7, %c0_11], %18 {strides = array<i32>} : memref<64x384xf32, #tpu.memory_space<vmem>>, vector<1x384xf32>,
    %20 = vector.extract_strided_slice %1 {offsets = [0, 25], sizes = [1, 384], strides = [1, 1]} : vector<1x640xf32> to vector<1x384xf32>
    %c8 = arith.constant 8 : index
    %c0_12 = arith.constant 0 : index
    %21 = vector.load %arg7[%c8, %c0_12] : memref<64x384xf32, #tpu.memory_space<vmem>>, vector<1x384xf32>
    tpu.vector_store %arg7[%c8, %c0_12], %20 {strides = array<i32>} : memref<64x384xf32, #tpu.memory_space<vmem>>, vector<1x384xf32>,
    %22 = vector.extract_strided_slice %1 {offsets = [0, 26], sizes = [1, 384], strides = [1, 1]} : vector<1x640xf32> to vector<1x384xf32>
    %c9 = arith.constant 9 : index
    %c0_13 = arith.constant 0 : index
    %23 = vector.load %arg7[%c9, %c0_13] : memref<64x384xf32, #tpu.memory_space<vmem>>, vector<1x384xf32>
    tpu.vector_store %arg7[%c9, %c0_13], %22 {strides = array<i32>} : memref<64x384xf32, #tpu.memory_space<vmem>>, vector<1x384xf32>,
    %24 = vector.extract_strided_slice %1 {offsets = [0, 27], sizes = [1, 384], strides = [1, 1]} : vector<1x640xf32> to vector<1x384xf32>
    %c10 = arith.constant 10 : index
    %c0_14 = arith.constant 0 : index
    %25 = vector.load %arg7[%c10, %c0_14] : memref<64x384xf32, #tpu.memory_space<vmem>>, vector<1x384xf32>
    tpu.vector_store %arg7[%c10, %c0_14], %24 {strides = array<i32>} : memref<64x384xf32, #tpu.memory_space<vmem>>, vector<1x384xf32>,
    %26 = vector.extract_strided_slice %1 {offsets = [0, 28], sizes = [1, 384], strides = [1, 1]} : vector<1x640xf32> to vector<1x384xf32>
    %c11 = arith.constant 11 : index
    %c0_15 = arith.constant 0 : index
    %27 = vector.load %arg7[%c11, %c0_15] : memref<64x384xf32, #tpu.memory_space<vmem>>, vector<1x384xf32>
    tpu.vector_store %arg7[%c11, %c0_15], %26 {strides = array<i32>} : memref<64x384xf32, #tpu.memory_space<vmem>>, vector<1x384xf32>,
    %28 = vector.extract_strided_slice %1 {offsets = [0, 29], sizes = [1, 384], strides = [1, 1]} : vector<1x640xf32> to vector<1x384xf32>
    %c12 = arith.constant 12 : index
    %c0_16 = arith.constant 0 : index
    %29 = vector.load %arg7[%c12, %c0_16] : memref<64x384xf32, #tpu.memory_space<vmem>>, vector<1x384xf32>
    tpu.vector_store %arg7[%c12, %c0_16], %28 {strides = array<i32>} : memref<64x384xf32, #tpu.memory_space<vmem>>, vector<1x384xf32>,
    %30 = vector.extract_strided_slice %1 {offsets = [0, 30], sizes = [1, 384], strides = [1, 1]} : vector<1x640xf32> to vector<1x384xf32>
    %c13 = arith.constant 13 : index
    %c0_17 = arith.constant 0 : index
    %31 = vector.load %arg7[%c13, %c0_17] : memref<64x384xf32, #tpu.memory_space<vmem>>, vector<1x384xf32>
    tpu.vector_store %arg7[%c13, %c0_17], %30 {strides = array<i32>} : memref<64x384xf32, #tpu.memory_space<vmem>>, vector<1x384xf32>,
    %32 = vector.extract_strided_slice %1 {offsets = [0, 48], sizes = [1, 384], strides = [1, 1]} : vector<1x640xf32> to vector<1x384xf32>
    %c14 = arith.constant 14 : index
    %c0_18 = arith.constant 0 : index
    %33 = vector.load %arg7[%c14, %c0_18] : memref<64x384xf32, #tpu.memory_space<vmem>>, vector<1x384xf32>
    tpu.vector_store %arg7[%c14, %c0_18], %32 {strides = array<i32>} : memref<64x384xf32, #tpu.memory_space<vmem>>, vector<1x384xf32>,
    %34 = vector.extract_strided_slice %1 {offsets = [0, 49], sizes = [1, 384], strides = [1, 1]} : vector<1x640xf32> to vector<1x384xf32>
    %c15 = arith.constant 15 : index
    %c0_19 = arith.constant 0 : index
    %35 = vector.load %arg7[%c15, %c0_19] : memref<64x384xf32, #tpu.memory_space<vmem>>, vector<1x384xf32>
    tpu.vector_store %arg7[%c15, %c0_19], %34 {strides = array<i32>} : memref<64x384xf32, #tpu.memory_space<vmem>>, vector<1x384xf32>,
    %36 = vector.extract_strided_slice %1 {offsets = [0, 50], sizes = [1, 384], strides = [1, 1]} : vector<1x640xf32> to vector<1x384xf32>
    %c16 = arith.constant 16 : index
    %c0_20 = arith.constant 0 : index
    %37 = vector.load %arg7[%c16, %c0_20] : memref<64x384xf32, #tpu.memory_space<vmem>>, vector<1x384xf32>
    tpu.vector_store %arg7[%c16, %c0_20], %36 {strides = array<i32>} : memref<64x384xf32, #tpu.memory_space<vmem>>, vector<1x384xf32>,
    %38 = vector.extract_strided_slice %1 {offsets = [0, 51], sizes = [1, 384], strides = [1, 1]} : vector<1x640xf32> to vector<1x384xf32>
    %c17 = arith.constant 17 : index
    %c0_21 = arith.constant 0 : index
    %39 = vector.load %arg7[%c17, %c0_21] : memref<64x384xf32, #tpu.memory_space<vmem>>, vector<1x384xf32>
    tpu.vector_store %arg7[%c17, %c0_21], %38 {strides = array<i32>} : memref<64x384xf32, #tpu.memory_space<vmem>>, vector<1x384xf32>,
    %40 = vector.extract_strided_slice %1 {offsets = [0, 52], sizes = [1, 384], strides = [1, 1]} : vector<1x640xf32> to vector<1x384xf32>
    %c18 = arith.constant 18 : index
    %c0_22 = arith.constant 0 : index
    %41 = vector.load %arg7[%c18, %c0_22] : memref<64x384xf32, #tpu.memory_space<vmem>>, vector<1x384xf32>
    tpu.vector_store %arg7[%c18, %c0_22], %40 {strides = array<i32>} : memref<64x384xf32, #tpu.memory_space<vmem>>, vector<1x384xf32>,
    %42 = vector.extract_strided_slice %1 {offsets = [0, 53], sizes = [1, 384], strides = [1, 1]} : vector<1x640xf32> to vector<1x384xf32>
    %c19 = arith.constant 19 : index
    %c0_23 = arith.constant 0 : index
    %43 = vector.load %arg7[%c19, %c0_23] : memref<64x384xf32, #tpu.memory_space<vmem>>, vector<1x384xf32>
    tpu.vector_store %arg7[%c19, %c0_23], %42 {strides = array<i32>} : memref<64x384xf32, #tpu.memory_space<vmem>>, vector<1x384xf32>,
    %44 = vector.extract_strided_slice %1 {offsets = [0, 54], sizes = [1, 384], strides = [1, 1]} : vector<1x640xf32> to vector<1x384xf32>
    %c20 = arith.constant 20 : index
    %c0_24 = arith.constant 0 : index
    %45 = vector.load %arg7[%c20, %c0_24] : memref<64x384xf32, #tpu.memory_space<vmem>>, vector<1x384xf32>
    tpu.vector_store %arg7[%c20, %c0_24], %44 {strides = array<i32>} : memref<64x384xf32, #tpu.memory_space<vmem>>, vector<1x384xf32>,
    %46 = vector.extract_strided_slice %1 {offsets = [0, 72], sizes = [1, 384], strides = [1, 1]} : vector<1x640xf32> to vector<1x384xf32>
    %c21 = arith.constant 21 : index
    %c0_25 = arith.constant 0 : index
    %47 = vector.load %arg7[%c21, %c0_25] : memref<64x384xf32, #tpu.memory_space<vmem>>, vector<1x384xf32>
    tpu.vector_store %arg7[%c21, %c0_25], %46 {strides = array<i32>} : memref<64x384xf32, #tpu.memory_space<vmem>>, vector<1x384xf32>,
    %48 = vector.extract_strided_slice %1 {offsets = [0, 73], sizes = [1, 384], strides = [1, 1]} : vector<1x640xf32> to vector<1x384xf32>
    %c22 = arith.constant 22 : index
    %c0_26 = arith.constant 0 : index
    %49 = vector.load %arg7[%c22, %c0_26] : memref<64x384xf32, #tpu.memory_space<vmem>>, vector<1x384xf32>
    tpu.vector_store %arg7[%c22, %c0_26], %48 {strides = array<i32>} : memref<64x384xf32, #tpu.memory_space<vmem>>, vector<1x384xf32>,
    %50 = vector.extract_strided_slice %1 {offsets = [0, 74], sizes = [1, 384], strides = [1, 1]} : vector<1x640xf32> to vector<1x384xf32>
    %c23 = arith.constant 23 : index
    %c0_27 = arith.constant 0 : index
    %51 = vector.load %arg7[%c23, %c0_27] : memref<64x384xf32, #tpu.memory_space<vmem>>, vector<1x384xf32>
    tpu.vector_store %arg7[%c23, %c0_27], %50 {strides = array<i32>} : memref<64x384xf32, #tpu.memory_space<vmem>>, vector<1x384xf32>,
    %52 = vector.extract_strided_slice %1 {offsets = [0, 75], sizes = [1, 384], strides = [1, 1]} : vector<1x640xf32> to vector<1x384xf32>
    %c24 = arith.constant 24 : index
    %c0_28 = arith.constant 0 : index
    %53 = vector.load %arg7[%c24, %c0_28] : memref<64x384xf32, #tpu.memory_space<vmem>>, vector<1x384xf32>
    tpu.vector_store %arg7[%c24, %c0_28], %52 {strides = array<i32>} : memref<64x384xf32, #tpu.memory_space<vmem>>, vector<1x384xf32>,
    %54 = vector.extract_strided_slice %1 {offsets = [0, 76], sizes = [1, 384], strides = [1, 1]} : vector<1x640xf32> to vector<1x384xf32>
    %c25 = arith.constant 25 : index
    %c0_29 = arith.constant 0 : index
    %55 = vector.load %arg7[%c25, %c0_29] : memref<64x384xf32, #tpu.memory_space<vmem>>, vector<1x384xf32>
    tpu.vector_store %arg7[%c25, %c0_29], %54 {strides = array<i32>} : memref<64x384xf32, #tpu.memory_space<vmem>>, vector<1x384xf32>,
    %56 = vector.extract_strided_slice %1 {offsets = [0, 77], sizes = [1, 384], strides = [1, 1]} : vector<1x640xf32> to vector<1x384xf32>
    %c26 = arith.constant 26 : index
    %c0_30 = arith.constant 0 : index
    %57 = vector.load %arg7[%c26, %c0_30] : memref<64x384xf32, #tpu.memory_space<vmem>>, vector<1x384xf32>
    tpu.vector_store %arg7[%c26, %c0_30], %56 {strides = array<i32>} : memref<64x384xf32, #tpu.memory_space<vmem>>, vector<1x384xf32>,
    %58 = vector.extract_strided_slice %1 {offsets = [0, 78], sizes = [1, 384], strides = [1, 1]} : vector<1x640xf32> to vector<1x384xf32>
    %c27 = arith.constant 27 : index
    %c0_31 = arith.constant 0 : index
    %59 = vector.load %arg7[%c27, %c0_31] : memref<64x384xf32, #tpu.memory_space<vmem>>, vector<1x384xf32>
    tpu.vector_store %arg7[%c27, %c0_31], %58 {strides = array<i32>} : memref<64x384xf32, #tpu.memory_space<vmem>>, vector<1x384xf32>,
    %60 = vector.extract_strided_slice %1 {offsets = [0, 96], sizes = [1, 384], strides = [1, 1]} : vector<1x640xf32> to vector<1x384xf32>
    %c28 = arith.constant 28 : index
    %c0_32 = arith.constant 0 : index
    %61 = vector.load %arg7[%c28, %c0_32] : memref<64x384xf32, #tpu.memory_space<vmem>>, vector<1x384xf32>
    tpu.vector_store %arg7[%c28, %c0_32], %60 {strides = array<i32>} : memref<64x384xf32, #tpu.memory_space<vmem>>, vector<1x384xf32>,
    %62 = vector.extract_strided_slice %1 {offsets = [0, 97], sizes = [1, 384], strides = [1, 1]} : vector<1x640xf32> to vector<1x384xf32>
    %c29 = arith.constant 29 : index
    %c0_33 = arith.constant 0 : index
    %63 = vector.load %arg7[%c29, %c0_33] : memref<64x384xf32, #tpu.memory_space<vmem>>, vector<1x384xf32>
    tpu.vector_store %arg7[%c29, %c0_33], %62 {strides = array<i32>} : memref<64x384xf32, #tpu.memory_space<vmem>>, vector<1x384xf32>,
    %64 = vector.extract_strided_slice %1 {offsets = [0, 98], sizes = [1, 384], strides = [1, 1]} : vector<1x640xf32> to vector<1x384xf32>
    %c30 = arith.constant 30 : index
    %c0_34 = arith.constant 0 : index
    %65 = vector.load %arg7[%c30, %c0_34] : memref<64x384xf32, #tpu.memory_space<vmem>>, vector<1x384xf32>
    tpu.vector_store %arg7[%c30, %c0_34], %64 {strides = array<i32>} : memref<64x384xf32, #tpu.memory_space<vmem>>, vector<1x384xf32>,
    %66 = vector.extract_strided_slice %1 {offsets = [0, 99], sizes = [1, 384], strides = [1, 1]} : vector<1x640xf32> to vector<1x384xf32>
    %c31 = arith.constant 31 : index
    %c0_35 = arith.constant 0 : index
    %67 = vector.load %arg7[%c31, %c0_35] : memref<64x384xf32, #tpu.memory_space<vmem>>, vector<1x384xf32>
    tpu.vector_store %arg7[%c31, %c0_35], %66 {strides = array<i32>} : memref<64x384xf32, #tpu.memory_space<vmem>>, vector<1x384xf32>,
    %68 = vector.extract_strided_slice %1 {offsets = [0, 100], sizes = [1, 384], strides = [1, 1]} : vector<1x640xf32> to vector<1x384xf32>
    %c32 = arith.constant 32 : index
    %c0_36 = arith.constant 0 : index
    %69 = vector.load %arg7[%c32, %c0_36] : memref<64x384xf32, #tpu.memory_space<vmem>>, vector<1x384xf32>
    tpu.vector_store %arg7[%c32, %c0_36], %68 {strides = array<i32>} : memref<64x384xf32, #tpu.memory_space<vmem>>, vector<1x384xf32>,
    %70 = vector.extract_strided_slice %1 {offsets = [0, 101], sizes = [1, 384], strides = [1, 1]} : vector<1x640xf32> to vector<1x384xf32>
    %c33 = arith.constant 33 : index
    %c0_37 = arith.constant 0 : index
    %71 = vector.load %arg7[%c33, %c0_37] : memref<64x384xf32, #tpu.memory_space<vmem>>, vector<1x384xf32>
    tpu.vector_store %arg7[%c33, %c0_37], %70 {strides = array<i32>} : memref<64x384xf32, #tpu.memory_space<vmem>>, vector<1x384xf32>,
    %72 = vector.extract_strided_slice %1 {offsets = [0, 102], sizes = [1, 384], strides = [1, 1]} : vector<1x640xf32> to vector<1x384xf32>
    %c34 = arith.constant 34 : index
    %c0_38 = arith.constant 0 : index
    %73 = vector.load %arg7[%c34, %c0_38] : memref<64x384xf32, #tpu.memory_space<vmem>>, vector<1x384xf32>
    tpu.vector_store %arg7[%c34, %c0_38], %72 {strides = array<i32>} : memref<64x384xf32, #tpu.memory_space<vmem>>, vector<1x384xf32>,
    %74 = vector.extract_strided_slice %1 {offsets = [0, 120], sizes = [1, 384], strides = [1, 1]} : vector<1x640xf32> to vector<1x384xf32>
    %c35 = arith.constant 35 : index
    %c0_39 = arith.constant 0 : index
    %75 = vector.load %arg7[%c35, %c0_39] : memref<64x384xf32, #tpu.memory_space<vmem>>, vector<1x384xf32>
    tpu.vector_store %arg7[%c35, %c0_39], %74 {strides = array<i32>} : memref<64x384xf32, #tpu.memory_space<vmem>>, vector<1x384xf32>,
    %76 = vector.extract_strided_slice %1 {offsets = [0, 121], sizes = [1, 384], strides = [1, 1]} : vector<1x640xf32> to vector<1x384xf32>
    %c36 = arith.constant 36 : index
    %c0_40 = arith.constant 0 : index
    %77 = vector.load %arg7[%c36, %c0_40] : memref<64x384xf32, #tpu.memory_space<vmem>>, vector<1x384xf32>
    tpu.vector_store %arg7[%c36, %c0_40], %76 {strides = array<i32>} : memref<64x384xf32, #tpu.memory_space<vmem>>, vector<1x384xf32>,
    %78 = vector.extract_strided_slice %1 {offsets = [0, 122], sizes = [1, 384], strides = [1, 1]} : vector<1x640xf32> to vector<1x384xf32>
    %c37 = arith.constant 37 : index
    %c0_41 = arith.constant 0 : index
    %79 = vector.load %arg7[%c37, %c0_41] : memref<64x384xf32, #tpu.memory_space<vmem>>, vector<1x384xf32>
    tpu.vector_store %arg7[%c37, %c0_41], %78 {strides = array<i32>} : memref<64x384xf32, #tpu.memory_space<vmem>>, vector<1x384xf32>,
    %80 = vector.extract_strided_slice %1 {offsets = [0, 123], sizes = [1, 384], strides = [1, 1]} : vector<1x640xf32> to vector<1x384xf32>
    %c38 = arith.constant 38 : index
    %c0_42 = arith.constant 0 : index
    %81 = vector.load %arg7[%c38, %c0_42] : memref<64x384xf32, #tpu.memory_space<vmem>>, vector<1x384xf32>
    tpu.vector_store %arg7[%c38, %c0_42], %80 {strides = array<i32>} : memref<64x384xf32, #tpu.memory_space<vmem>>, vector<1x384xf32>,
    %82 = vector.extract_strided_slice %1 {offsets = [0, 124], sizes = [1, 384], strides = [1, 1]} : vector<1x640xf32> to vector<1x384xf32>
    %c39 = arith.constant 39 : index
    %c0_43 = arith.constant 0 : index
    %83 = vector.load %arg7[%c39, %c0_43] : memref<64x384xf32, #tpu.memory_space<vmem>>, vector<1x384xf32>
    tpu.vector_store %arg7[%c39, %c0_43], %82 {strides = array<i32>} : memref<64x384xf32, #tpu.memory_space<vmem>>, vector<1x384xf32>,
    %84 = vector.extract_strided_slice %1 {offsets = [0, 125], sizes = [1, 384], strides = [1, 1]} : vector<1x640xf32> to vector<1x384xf32>
    %c40 = arith.constant 40 : index
    %c0_44 = arith.constant 0 : index
    %85 = vector.load %arg7[%c40, %c0_44] : memref<64x384xf32, #tpu.memory_space<vmem>>, vector<1x384xf32>
    tpu.vector_store %arg7[%c40, %c0_44], %84 {strides = array<i32>} : memref<64x384xf32, #tpu.memory_space<vmem>>, vector<1x384xf32>,
    %86 = vector.extract_strided_slice %1 {offsets = [0, 126], sizes = [1, 384], strides = [1, 1]} : vector<1x640xf32> to vector<1x384xf32>
    %c41 = arith.constant 41 : index
    %c0_45 = arith.constant 0 : index
    %87 = vector.load %arg7[%c41, %c0_45] : memref<64x384xf32, #tpu.memory_space<vmem>>, vector<1x384xf32>
    tpu.vector_store %arg7[%c41, %c0_45], %86 {strides = array<i32>} : memref<64x384xf32, #tpu.memory_space<vmem>>, vector<1x384xf32>,
    %88 = vector.extract_strided_slice %1 {offsets = [0, 144], sizes = [1, 384], strides = [1, 1]} : vector<1x640xf32> to vector<1x384xf32>
    %c42 = arith.constant 42 : index
    %c0_46 = arith.constant 0 : index
    %89 = vector.load %arg7[%c42, %c0_46] : memref<64x384xf32, #tpu.memory_space<vmem>>, vector<1x384xf32>
    tpu.vector_store %arg7[%c42, %c0_46], %88 {strides = array<i32>} : memref<64x384xf32, #tpu.memory_space<vmem>>, vector<1x384xf32>,
    %90 = vector.extract_strided_slice %1 {offsets = [0, 145], sizes = [1, 384], strides = [1, 1]} : vector<1x640xf32> to vector<1x384xf32>
    %c43 = arith.constant 43 : index
    %c0_47 = arith.constant 0 : index
    %91 = vector.load %arg7[%c43, %c0_47] : memref<64x384xf32, #tpu.memory_space<vmem>>, vector<1x384xf32>
    tpu.vector_store %arg7[%c43, %c0_47], %90 {strides = array<i32>} : memref<64x384xf32, #tpu.memory_space<vmem>>, vector<1x384xf32>,
    %92 = vector.extract_strided_slice %1 {offsets = [0, 146], sizes = [1, 384], strides = [1, 1]} : vector<1x640xf32> to vector<1x384xf32>
    %c44 = arith.constant 44 : index
    %c0_48 = arith.constant 0 : index
    %93 = vector.load %arg7[%c44, %c0_48] : memref<64x384xf32, #tpu.memory_space<vmem>>, vector<1x384xf32>
    tpu.vector_store %arg7[%c44, %c0_48], %92 {strides = array<i32>} : memref<64x384xf32, #tpu.memory_space<vmem>>, vector<1x384xf32>,
    %94 = vector.extract_strided_slice %1 {offsets = [0, 147], sizes = [1, 384], strides = [1, 1]} : vector<1x640xf32> to vector<1x384xf32>
    %c45 = arith.constant 45 : index
    %c0_49 = arith.constant 0 : index
    %95 = vector.load %arg7[%c45, %c0_49] : memref<64x384xf32, #tpu.memory_space<vmem>>, vector<1x384xf32>
    tpu.vector_store %arg7[%c45, %c0_49], %94 {strides = array<i32>} : memref<64x384xf32, #tpu.memory_space<vmem>>, vector<1x384xf32>,
    %96 = vector.extract_strided_slice %1 {offsets = [0, 148], sizes = [1, 384], strides = [1, 1]} : vector<1x640xf32> to vector<1x384xf32>
    %c46 = arith.constant 46 : index
    %c0_50 = arith.constant 0 : index
    %97 = vector.load %arg7[%c46, %c0_50] : memref<64x384xf32, #tpu.memory_space<vmem>>, vector<1x384xf32>
    tpu.vector_store %arg7[%c46, %c0_50], %96 {strides = array<i32>} : memref<64x384xf32, #tpu.memory_space<vmem>>, vector<1x384xf32>,
    %98 = vector.extract_strided_slice %1 {offsets = [0, 149], sizes = [1, 384], strides = [1, 1]} : vector<1x640xf32> to vector<1x384xf32>
    %c47 = arith.constant 47 : index
    %c0_51 = arith.constant 0 : index
    %99 = vector.load %arg7[%c47, %c0_51] : memref<64x384xf32, #tpu.memory_space<vmem>>, vector<1x384xf32>
    tpu.vector_store %arg7[%c47, %c0_51], %98 {strides = array<i32>} : memref<64x384xf32, #tpu.memory_space<vmem>>, vector<1x384xf32>,
    %100 = vector.extract_strided_slice %1 {offsets = [0, 150], sizes = [1, 384], strides = [1, 1]} : vector<1x640xf32> to vector<1x384xf32>
    %c48_52 = arith.constant 48 : index
    %c0_53 = arith.constant 0 : index
    %101 = vector.load %arg7[%c48_52, %c0_53] : memref<64x384xf32, #tpu.memory_space<vmem>>, vector<1x384xf32>
    tpu.vector_store %arg7[%c48_52, %c0_53], %100 {strides = array<i32>} : memref<64x384xf32, #tpu.memory_space<vmem>>, vector<1x384xf32>,
    %c0_54 = arith.constant 0 : index
    %c0_55 = arith.constant 0 : index
    %102 = vector.load %arg4[%c0_54, %c0_55] : memref<1x384xf32, #tpu.memory_space<vmem>>, vector<1x384xf32>
    %c0_56 = arith.constant 0 : index
    %c0_57 = arith.constant 0 : index
    %103 = vector.load %arg2[%c0_56, %c0_57] : memref<32x64xbf16, #tpu.memory_space<vmem>>, vector<32x64xbf16>
    %c0_58 = arith.constant 0 : index
    %c0_59 = arith.constant 0 : index
    %104 = vector.load %arg7[%c0_58, %c0_59] : memref<64x384xf32, #tpu.memory_space<vmem>>, vector<64x384xf32>
    %105 = arith.truncf %104 : vector<64x384xf32> to vector<64x384xbf16>
    %cst_60 = arith.constant dense<0.000000e+00> : vector<32x384xf32>
    %106 = tpu.matmul %103, %105, %cst_60 {dimension_numbers = #tpu.dot_dimension_numbers<[1], [0], [0], [1], [0, 0, 1, 1], [], []>} : vector<32x64xbf16>, vector<64x384xbf16>, vector<32x384xf32> -> vector<32x384xf32>
    %107 = vector.broadcast %102 : vector<1x384xf32> to vector<32x384xf32>
    %108 = arith.mulf %106, %107 : vector<32x384xf32>
    %109 = arith.truncf %108 : vector<32x384xf32> to vector<32x384xbf16>
    %c0_61 = arith.constant 0 : index
    %c0_62 = arith.constant 0 : index
    %c0_63 = arith.constant 0 : index
    %c0_64 = arith.constant 0 : index
    %110 = vector.load %arg5[%c0_61, %c0_62, %c0_63, %c0_64] : memref<1x1x32x384xf32, #tpu.memory_space<vmem>>, vector<1x1x32x384xf32>
    %111 = vector.shape_cast %110 : vector<1x1x32x384xf32> to vector<32x384xf32>
    %112 = vector.shape_cast %108 : vector<32x384xf32> to vector<1x1x32x384xf32>
    tpu.vector_store %arg5[%c0_61, %c0_62, %c0_63, %c0_64], %112 {strides = array<i32>} : memref<1x1x32x384xf32, #tpu.memory_space<vmem>>, vector<1x1x32x384xf32>,
    %cst_65 = arith.constant 0.000000e+00 : bf16
    %113 = vector.broadcast %cst_65 : bf16 to vector<32x128xbf16>
    %c0_66 = arith.constant 0 : index
    %c0_67 = arith.constant 0 : index
    %114 = vector.load %arg8[%c0_66, %c0_67] : memref<32x640xbf16, #tpu.memory_space<vmem>>, vector<32x128xbf16>
    tpu.vector_store %arg8[%c0_66, %c0_67], %113 {strides = array<i32>} : memref<32x640xbf16, #tpu.memory_space<vmem>>, vector<32x128xbf16>,
    %cst_68 = arith.constant 0.000000e+00 : bf16
    %115 = vector.broadcast %cst_68 : bf16 to vector<32x128xbf16>
    %c0_69 = arith.constant 0 : index
    %c512 = arith.constant 512 : index
    %116 = vector.load %arg8[%c0_69, %c512] : memref<32x640xbf16, #tpu.memory_space<vmem>>, vector<32x128xbf16>
    tpu.vector_store %arg8[%c0_69, %c512], %115 {strides = array<i32>} : memref<32x640xbf16, #tpu.memory_space<vmem>>, vector<32x128xbf16>,
    %c0_70 = arith.constant 0 : index
    %c128 = arith.constant 128 : index
    %117 = vector.load %arg8[%c0_70, %c128] : memref<32x640xbf16, #tpu.memory_space<vmem>>, vector<32x384xbf16>
    tpu.vector_store %arg8[%c0_70, %c128], %109 {strides = array<i32>} : memref<32x640xbf16, #tpu.memory_space<vmem>>, vector<32x384xbf16>,
    %c0_71 = arith.constant 0 : index
    %c0_72 = arith.constant 0 : index
    %118 = vector.load %arg3[%c0_71, %c0_72] : memref<64x32xbf16, #tpu.memory_space<vmem>>, vector<64x32xbf16>
    %c0_73 = arith.constant 0 : index
    %c0_74 = arith.constant 0 : index
    %119 = vector.load %arg8[%c0_73, %c0_74] : memref<32x640xbf16, #tpu.memory_space<vmem>>, vector<32x640xbf16>
    %cst_75 = arith.constant dense<0.000000e+00> : vector<64x640xf32>
    %120 = tpu.matmul %118, %119, %cst_75 {dimension_numbers = #tpu.dot_dimension_numbers<[1], [0], [0], [1], [0, 0, 1, 1], [], []>} : vector<64x32xbf16>, vector<32x640xbf16>, vector<64x640xf32> -> vector<64x640xf32>
    %c0_76 = arith.constant 0 : index
    %c0_77 = arith.constant 0 : index
    %121 = vector.load %arg9[%c0_76, %c0_77] : memref<64x640xf32, #tpu.memory_space<vmem>>, vector<64x640xf32>
    tpu.vector_store %arg9[%c0_76, %c0_77], %120 {strides = array<i32>} : memref<64x640xf32, #tpu.memory_space<vmem>>, vector<64x640xf32>,
    %c0_78 = arith.constant 0 : index
    %c53 = arith.constant 53 : index
    %122 = vector.load %arg9[%c0_78, %c53] : memref<64x640xf32, #tpu.memory_space<vmem>>, vector<1x384xf32>
    %c1_79 = arith.constant 1 : index
    %c54 = arith.constant 54 : index
    %123 = vector.load %arg9[%c1_79, %c54] : memref<64x640xf32, #tpu.memory_space<vmem>>, vector<1x384xf32>
    %c2_80 = arith.constant 2 : index
    %c55 = arith.constant 55 : index
    %124 = vector.load %arg9[%c2_80, %c55] : memref<64x640xf32, #tpu.memory_space<vmem>>, vector<1x384xf32>
    %c3_81 = arith.constant 3 : index
    %c56 = arith.constant 56 : index
    %125 = vector.load %arg9[%c3_81, %c56] : memref<64x640xf32, #tpu.memory_space<vmem>>, vector<1x384xf32>
    %c4_82 = arith.constant 4 : index
    %c57 = arith.constant 57 : index
    %126 = vector.load %arg9[%c4_82, %c57] : memref<64x640xf32, #tpu.memory_space<vmem>>, vector<1x384xf32>
    %c5_83 = arith.constant 5 : index
    %c58 = arith.constant 58 : index
    %127 = vector.load %arg9[%c5_83, %c58] : memref<64x640xf32, #tpu.memory_space<vmem>>, vector<1x384xf32>
    %c6_84 = arith.constant 6 : index
    %c59 = arith.constant 59 : index
    %128 = vector.load %arg9[%c6_84, %c59] : memref<64x640xf32, #tpu.memory_space<vmem>>, vector<1x384xf32>
    %c7_85 = arith.constant 7 : index
    %c77 = arith.constant 77 : index
    %129 = vector.load %arg9[%c7_85, %c77] : memref<64x640xf32, #tpu.memory_space<vmem>>, vector<1x384xf32>
    %130 = arith.addf %122, %123 : vector<1x384xf32>
    %131 = arith.addf %124, %125 : vector<1x384xf32>
    %132 = arith.addf %126, %127 : vector<1x384xf32>
    %133 = arith.addf %128, %129 : vector<1x384xf32>
    %134 = arith.addf %130, %131 : vector<1x384xf32>
    %135 = arith.addf %132, %133 : vector<1x384xf32>
    %136 = arith.addf %134, %135 : vector<1x384xf32>
    %c8_86 = arith.constant 8 : index
    %c78 = arith.constant 78 : index
    %137 = vector.load %arg9[%c8_86, %c78] : memref<64x640xf32, #tpu.memory_space<vmem>>, vector<1x384xf32>
    %c9_87 = arith.constant 9 : index
    %c79 = arith.constant 79 : index
    %138 = vector.load %arg9[%c9_87, %c79] : memref<64x640xf32, #tpu.memory_space<vmem>>, vector<1x384xf32>
    %c10_88 = arith.constant 10 : index
    %c80 = arith.constant 80 : index
    %139 = vector.load %arg9[%c10_88, %c80] : memref<64x640xf32, #tpu.memory_space<vmem>>, vector<1x384xf32>
    %c11_89 = arith.constant 11 : index
    %c81 = arith.constant 81 : index
    %140 = vector.load %arg9[%c11_89, %c81] : memref<64x640xf32, #tpu.memory_space<vmem>>, vector<1x384xf32>
    %c12_90 = arith.constant 12 : index
    %c82 = arith.constant 82 : index
    %141 = vector.load %arg9[%c12_90, %c82] : memref<64x640xf32, #tpu.memory_space<vmem>>, vector<1x384xf32>
    %c13_91 = arith.constant 13 : index
    %c83 = arith.constant 83 : index
    %142 = vector.load %arg9[%c13_91, %c83] : memref<64x640xf32, #tpu.memory_space<vmem>>, vector<1x384xf32>
    %c14_92 = arith.constant 14 : index
    %c101 = arith.constant 101 : index
    %143 = vector.load %arg9[%c14_92, %c101] : memref<64x640xf32, #tpu.memory_space<vmem>>, vector<1x384xf32>
    %c15_93 = arith.constant 15 : index
    %c102 = arith.constant 102 : index
    %144 = vector.load %arg9[%c15_93, %c102] : memref<64x640xf32, #tpu.memory_space<vmem>>, vector<1x384xf32>
    %145 = arith.addf %137, %138 : vector<1x384xf32>
    %146 = arith.addf %139, %140 : vector<1x384xf32>
    %147 = arith.addf %141, %142 : vector<1x384xf32>
    %148 = arith.addf %143, %144 : vector<1x384xf32>
    %149 = arith.addf %145, %146 : vector<1x384xf32>
    %150 = arith.addf %147, %148 : vector<1x384xf32>
    %151 = arith.addf %149, %150 : vector<1x384xf32>
    %152 = arith.addf %136, %151 : vector<1x384xf32>
    %c16_94 = arith.constant 16 : index
    %c103 = arith.constant 103 : index
    %153 = vector.load %arg9[%c16_94, %c103] : memref<64x640xf32, #tpu.memory_space<vmem>>, vector<1x384xf32>
    %c17_95 = arith.constant 17 : index
    %c104 = arith.constant 104 : index
    %154 = vector.load %arg9[%c17_95, %c104] : memref<64x640xf32, #tpu.memory_space<vmem>>, vector<1x384xf32>
    %c18_96 = arith.constant 18 : index
    %c105 = arith.constant 105 : index
    %155 = vector.load %arg9[%c18_96, %c105] : memref<64x640xf32, #tpu.memory_space<vmem>>, vector<1x384xf32>
    %c19_97 = arith.constant 19 : index
    %c106 = arith.constant 106 : index
    %156 = vector.load %arg9[%c19_97, %c106] : memref<64x640xf32, #tpu.memory_space<vmem>>, vector<1x384xf32>
    %c20_98 = arith.constant 20 : index
    %c107 = arith.constant 107 : index
    %157 = vector.load %arg9[%c20_98, %c107] : memref<64x640xf32, #tpu.memory_space<vmem>>, vector<1x384xf32>
    %c21_99 = arith.constant 21 : index
    %c125 = arith.constant 125 : index
    %158 = vector.load %arg9[%c21_99, %c125] : memref<64x640xf32, #tpu.memory_space<vmem>>, vector<1x384xf32>
    %c22_100 = arith.constant 22 : index
    %c126 = arith.constant 126 : index
    %159 = vector.load %arg9[%c22_100, %c126] : memref<64x640xf32, #tpu.memory_space<vmem>>, vector<1x384xf32>
    %c23_101 = arith.constant 23 : index
    %c127 = arith.constant 127 : index
    %160 = vector.load %arg9[%c23_101, %c127] : memref<64x640xf32, #tpu.memory_space<vmem>>, vector<1x384xf32>
    %161 = arith.addf %153, %154 : vector<1x384xf32>
    %162 = arith.addf %155, %156 : vector<1x384xf32>
    %163 = arith.addf %157, %158 : vector<1x384xf32>
    %164 = arith.addf %159, %160 : vector<1x384xf32>
    %165 = arith.addf %161, %162 : vector<1x384xf32>
    %166 = arith.addf %163, %164 : vector<1x384xf32>
    %167 = arith.addf %165, %166 : vector<1x384xf32>
    %168 = arith.addf %152, %167 : vector<1x384xf32>
    %c24_102 = arith.constant 24 : index
    %c128_103 = arith.constant 128 : index
    %169 = vector.load %arg9[%c24_102, %c128_103] : memref<64x640xf32, #tpu.memory_space<vmem>>, vector<1x384xf32>
    %c25_104 = arith.constant 25 : index
    %c129 = arith.constant 129 : index
    %170 = vector.load %arg9[%c25_104, %c129] : memref<64x640xf32, #tpu.memory_space<vmem>>, vector<1x384xf32>
    %c26_105 = arith.constant 26 : index
    %c130 = arith.constant 130 : index
    %171 = vector.load %arg9[%c26_105, %c130] : memref<64x640xf32, #tpu.memory_space<vmem>>, vector<1x384xf32>
    %c27_106 = arith.constant 27 : index
    %c131 = arith.constant 131 : index
    %172 = vector.load %arg9[%c27_106, %c131] : memref<64x640xf32, #tpu.memory_space<vmem>>, vector<1x384xf32>
    %c28_107 = arith.constant 28 : index
    %c149 = arith.constant 149 : index
    %173 = vector.load %arg9[%c28_107, %c149] : memref<64x640xf32, #tpu.memory_space<vmem>>, vector<1x384xf32>
    %c29_108 = arith.constant 29 : index
    %c150 = arith.constant 150 : index
    %174 = vector.load %arg9[%c29_108, %c150] : memref<64x640xf32, #tpu.memory_space<vmem>>, vector<1x384xf32>
    %c30_109 = arith.constant 30 : index
    %c151 = arith.constant 151 : index
    %175 = vector.load %arg9[%c30_109, %c151] : memref<64x640xf32, #tpu.memory_space<vmem>>, vector<1x384xf32>
    %c31_110 = arith.constant 31 : index
    %c152 = arith.constant 152 : index
    %176 = vector.load %arg9[%c31_110, %c152] : memref<64x640xf32, #tpu.memory_space<vmem>>, vector<1x384xf32>
    %177 = arith.addf %169, %170 : vector<1x384xf32>
    %178 = arith.addf %171, %172 : vector<1x384xf32>
    %179 = arith.addf %173, %174 : vector<1x384xf32>
    %180 = arith.addf %175, %176 : vector<1x384xf32>
    %181 = arith.addf %177, %178 : vector<1x384xf32>
    %182 = arith.addf %179, %180 : vector<1x384xf32>
    %183 = arith.addf %181, %182 : vector<1x384xf32>
    %184 = arith.addf %168, %183 : vector<1x384xf32>
    %c32_111 = arith.constant 32 : index
    %c153 = arith.constant 153 : index
    %185 = vector.load %arg9[%c32_111, %c153] : memref<64x640xf32, #tpu.memory_space<vmem>>, vector<1x384xf32>
    %c33_112 = arith.constant 33 : index
    %c154 = arith.constant 154 : index
    %186 = vector.load %arg9[%c33_112, %c154] : memref<64x640xf32, #tpu.memory_space<vmem>>, vector<1x384xf32>
    %c34_113 = arith.constant 34 : index
    %c155 = arith.constant 155 : index
    %187 = vector.load %arg9[%c34_113, %c155] : memref<64x640xf32, #tpu.memory_space<vmem>>, vector<1x384xf32>
    %c35_114 = arith.constant 35 : index
    %c173 = arith.constant 173 : index
    %188 = vector.load %arg9[%c35_114, %c173] : memref<64x640xf32, #tpu.memory_space<vmem>>, vector<1x384xf32>
    %c36_115 = arith.constant 36 : index
    %c174 = arith.constant 174 : index
    %189 = vector.load %arg9[%c36_115, %c174] : memref<64x640xf32, #tpu.memory_space<vmem>>, vector<1x384xf32>
    %c37_116 = arith.constant 37 : index
    %c175 = arith.constant 175 : index
    %190 = vector.load %arg9[%c37_116, %c175] : memref<64x640xf32, #tpu.memory_space<vmem>>, vector<1x384xf32>
    %c38_117 = arith.constant 38 : index
    %c176 = arith.constant 176 : index
    %191 = vector.load %arg9[%c38_117, %c176] : memref<64x640xf32, #tpu.memory_space<vmem>>, vector<1x384xf32>
    %c39_118 = arith.constant 39 : index
    %c177 = arith.constant 177 : index
    %192 = vector.load %arg9[%c39_118, %c177] : memref<64x640xf32, #tpu.memory_space<vmem>>, vector<1x384xf32>
    %193 = arith.addf %185, %186 : vector<1x384xf32>
    %194 = arith.addf %187, %188 : vector<1x384xf32>
    %195 = arith.addf %189, %190 : vector<1x384xf32>
    %196 = arith.addf %191, %192 : vector<1x384xf32>
    %197 = arith.addf %193, %194 : vector<1x384xf32>
    %198 = arith.addf %195, %196 : vector<1x384xf32>
    %199 = arith.addf %197, %198 : vector<1x384xf32>
    %200 = arith.addf %184, %199 : vector<1x384xf32>
    %c40_119 = arith.constant 40 : index
    %c178 = arith.constant 178 : index
    %201 = vector.load %arg9[%c40_119, %c178] : memref<64x640xf32, #tpu.memory_space<vmem>>, vector<1x384xf32>
    %c41_120 = arith.constant 41 : index
    %c179 = arith.constant 179 : index
    %202 = vector.load %arg9[%c41_120, %c179] : memref<64x640xf32, #tpu.memory_space<vmem>>, vector<1x384xf32>
    %c42_121 = arith.constant 42 : index
    %c197 = arith.constant 197 : index
    %203 = vector.load %arg9[%c42_121, %c197] : memref<64x640xf32, #tpu.memory_space<vmem>>, vector<1x384xf32>
    %c43_122 = arith.constant 43 : index
    %c198 = arith.constant 198 : index
    %204 = vector.load %arg9[%c43_122, %c198] : memref<64x640xf32, #tpu.memory_space<vmem>>, vector<1x384xf32>
    %c44_123 = arith.constant 44 : index
    %c199 = arith.constant 199 : index
    %205 = vector.load %arg9[%c44_123, %c199] : memref<64x640xf32, #tpu.memory_space<vmem>>, vector<1x384xf32>
    %c45_124 = arith.constant 45 : index
    %c200 = arith.constant 200 : index
    %206 = vector.load %arg9[%c45_124, %c200] : memref<64x640xf32, #tpu.memory_space<vmem>>, vector<1x384xf32>
    %c46_125 = arith.constant 46 : index
    %c201 = arith.constant 201 : index
    %207 = vector.load %arg9[%c46_125, %c201] : memref<64x640xf32, #tpu.memory_space<vmem>>, vector<1x384xf32>
    %c47_126 = arith.constant 47 : index
    %c202 = arith.constant 202 : index
    %208 = vector.load %arg9[%c47_126, %c202] : memref<64x640xf32, #tpu.memory_space<vmem>>, vector<1x384xf32>
    %209 = arith.addf %201, %202 : vector<1x384xf32>
    %210 = arith.addf %203, %204 : vector<1x384xf32>
    %211 = arith.addf %205, %206 : vector<1x384xf32>
    %212 = arith.addf %207, %208 : vector<1x384xf32>
    %213 = arith.addf %209, %210 : vector<1x384xf32>
    %214 = arith.addf %211, %212 : vector<1x384xf32>
    %215 = arith.addf %213, %214 : vector<1x384xf32>
    %216 = arith.addf %200, %215 : vector<1x384xf32>
    %c48_127 = arith.constant 48 : index
    %c203 = arith.constant 203 : index
    %217 = vector.load %arg9[%c48_127, %c203] : memref<64x640xf32, #tpu.memory_space<vmem>>, vector<1x384xf32>
    %218 = arith.addf %216, %217 : vector<1x384xf32>
    %219 = arith.mulf %218, %102 : vector<1x384xf32>
    %c0_128 = arith.constant 0 : index
    %c0_129 = arith.constant 0 : index
    %c0_130 = arith.constant 0 : index
    %c0_131 = arith.constant 0 : index
    %220 = vector.load %arg6[%c0_128, %c0_129, %c0_130, %c0_131] : memref<1x1x1x384xf32, #tpu.memory_space<vmem>>, vector<1x1x1x384xf32>
    %221 = vector.shape_cast %220 : vector<1x1x1x384xf32> to vector<1x384xf32>
    %222 = vector.shape_cast %219 : vector<1x384xf32> to vector<1x1x1x384xf32>
    tpu.vector_store %arg6[%c0_128, %c0_129, %c0_130, %c0_131], %222 {strides = array<i32>} : memref<1x1x1x384xf32, #tpu.memory_space<vmem>>, vector<1x1x1x384xf32>,
    return
  }
  func.func @transform_0(%arg0: i32) -> (i32, i32, i32) {
    %c0_i32 = arith.constant 0 : i32
    %c0_i32_0 = arith.constant 0 : i32
    %c0_i32_1 = arith.constant 0 : i32
    return %arg0, %c0_i32, %c0_i32_0 : i32, i32, i32
  }
  func.func @transform_1(%arg0: i32) -> (i32, i32) {
    %c0_i32 = arith.constant 0 : i32
    %c0_i32_0 = arith.constant 0 : i32
    %c0_i32_1 = arith.constant 0 : i32
    return %c0_i32, %c0_i32_0 : i32, i32
  }
  func.func @transform_2(%arg0: i32) -> (i32, i32) {
    %c0_i32 = arith.constant 0 : i32
    %c0_i32_0 = arith.constant 0 : i32
    %c0_i32_1 = arith.constant 0 : i32
    return %c0_i32, %c0_i32_0 : i32, i32
  }
  func.func @transform_3(%arg0: i32) -> (i32, i32) {
    %c0_i32 = arith.constant 0 : i32
    %c0_i32_0 = arith.constant 0 : i32
    %c0_i32_1 = arith.constant 0 : i32
    return %c0_i32, %c0_i32_0 : i32, i32
  }
  func.func @transform_4(%arg0: i32) -> (i32, i32, i32, i32) {
    %c0_i32 = arith.constant 0 : i32
    %c0_i32_0 = arith.constant 0 : i32
    %c0_i32_1 = arith.constant 0 : i32
    %c0_i32_2 = arith.constant 0 : i32
    return %arg0, %c0_i32, %c0_i32_0, %c0_i32_1 : i32, i32, i32, i32
  }
  func.func @transform_5(%arg0: i32) -> (i32, i32, i32, i32) {
    %c0_i32 = arith.constant 0 : i32
    %c0_i32_0 = arith.constant 0 : i32
    %c0_i32_1 = arith.constant 0 : i32
    %c0_i32_2 = arith.constant 0 : i32
    return %arg0, %c0_i32, %c0_i32_0, %c0_i32_1 : i32, i32, i32, i32
  }
}

</mosaic_0001>

<llo_original>
// kernel: zpzp_forward.1
$region0: #{zpzp_forward.1}
  #allocation0 [shape = 'u32[]', space=smem, size = 0x4, offset = 0x4, fixed_abs, tag = 'smem constant byte address 0x4 - core index']
  #allocation1 [shape = 'u32[144,128]{1,0:T(1,128)}', space=vmem, size = 0x12000, scoped, tag = 'internal scratch']
  #allocation2 [shape = 'f32[64,384]{1,0:T(8,128)}', space=vmem, size = 0x18000, scoped, tag = 'scratch operand']
  #allocation3 [shape = 'bf16[32,640]{1,0:T(16,128)(2,1)}', space=vmem, size = 0xa000, scoped, tag = 'scratch operand']
  #allocation4 [shape = 'f32[64,640]{1,0:T(8,128)}', space=vmem, size = 0x28000, scoped, tag = 'scratch operand']
  %s0 = inlined_call_operand.vmem [shape: f32[2,1,640], index: 0, kind: input, shape index: {}]
  %s1 = inlined_call_operand.vmem [shape: bf16[32,64], index: 1, kind: input, shape index: {}]
  %s2 = inlined_call_operand.vmem [shape: bf16[64,32], index: 2, kind: input, shape index: {}]
  %s3 = inlined_call_operand.vmem [shape: f32[1,384], index: 3, kind: input, shape index: {}]
  %s4 = inlined_call_operand.vmem [shape: f32[2,1,32,384], index: 4, kind: output, shape index: {0}]
  %s5 = inlined_call_operand.vmem [shape: f32[2,1,1,384], index: 5, kind: output, shape index: {1}]
  %6 = xla_tuple %s4, %s5
  %s7 = sld [smem:[#allocation0]]
  $region57: #{zpzp_forward.1} parent=0
    _
  %s9 = ssub.s32 1, %s7
  %s10 = scalar_select 0, %s9, %s7
  loop: start=0, step=1, limit=4
  $region2: #{zpzp_forward.1} parent=0 // loop_pre_header
    _
  $region3: #{zpzp_forward.1} parent=0 // loop_header
    %s12 = sphi 0, %s16
    %p13 = scmp.ge.s32.totalorder %s12, 4
    %s22 = sphi 0, %s24
    %s25 = sphi 0, %s22
    %s26 = sphi 0, %s25
    %s42 = sphi 0, %s26
    %s46 = sphi 0, %s46
    %s48 = sphi 0, %s46
    %s49 = sphi 0, %s48
    %s63 = sphi 0, %s49
    %s67 = sphi 0, %s67
    %s69 = sphi 0, %s67
    %s70 = sphi 0, %s69
    %s84 = sphi 0, %s70
    %s88 = sphi 0, %s88
    %s90 = sphi 0, %s88
    %s91 = sphi 0, %s90
    %s105 = sphi 0, %s91
    %s111 = sphi 0, %s113
    %s114 = sphi 0, %s111
    %s115 = sphi 0, %s114
    %s131 = sphi 0, %s115
    %s137 = sphi 0, %s139
    %s140 = sphi 0, %s137
    %s141 = sphi 0, %s140
    %s157 = sphi 0, %s141
  $region4: #{zpzp_forward.1} parent=0 // loop_header_branch
    %15 = sbr.rel (%p13) target = $region8
  $region5: #{zpzp_forward.1} parent=0 // loop_body
    %s17 = ssub.s32 %s12, 1
    %s18 = ssub.s32 %s12, 2
    %s19 = sadd.s32 %s12, 1
    %s20 = ssub.s32 %s12, %s19
    %p21 = scmp.eq.s32.totalorder %s20, 0
    %s23 = sadd.s32 %s22, 1
    %s24 = scalar_select %p21, %s22, %s23
    %p27 = pneg %p21
    %p28 = scmp.eq.s32.totalorder %s12, 1
    %p29 = por %p27, %p28
    %p30 = scmp.ne.s32.totalorder %s22, %s25
    %p31 = scmp.eq.s32.totalorder %s12, 0
    %p32 = por %p30, %p31
    %p33 = scmp.ne.s32.totalorder %s22, %s25
    %p34 = scmp.eq.s32.totalorder %s17, 1
    %p35 = por %p33, %p34
    %p36 = scmp.ne.s32.totalorder %s25, %s26
    %p37 = scmp.eq.s32.totalorder %s17, 0
    %p38 = por %p36, %p37
    %p39 = scmp.ne.s32.totalorder %s25, %s26
    %p40 = scmp.eq.s32.totalorder %s18, 1
    %p41 = por %p39, %p40
    %p43 = scmp.ne.s32.totalorder %s26, %s42
    %p44 = scmp.eq.s32.totalorder %s18, 0
    %p45 = por %p43, %p44
    %s47 = sadd.s32 %s46, 1
    %p50 = scmp.eq.s32.totalorder %s12, 1
    %p51 = scmp.ne.s32.totalorder %s46, %s48
    %p52 = scmp.eq.s32.totalorder %s12, 0
    %p53 = por %p51, %p52
    %p54 = scmp.ne.s32.totalorder %s46, %s48
    %p55 = scmp.eq.s32.totalorder %s17, 1
    %p56 = por %p54, %p55
    %p57 = scmp.ne.s32.totalorder %s48, %s49
    %p58 = scmp.eq.s32.totalorder %s17, 0
    %p59 = por %p57, %p58
    %p60 = scmp.ne.s32.totalorder %s48, %s49
    %p61 = scmp.eq.s32.totalorder %s18, 1
    %p62 = por %p60, %p61
    %p64 = scmp.ne.s32.totalorder %s49, %s63
    %p65 = scmp.eq.s32.totalorder %s18, 0
    %p66 = por %p64, %p65
    %s68 = sadd.s32 %s67, 1
    %p71 = scmp.eq.s32.totalorder %s12, 1
    %p72 = scmp.ne.s32.totalorder %s67, %s69
    %p73 = scmp.eq.s32.totalorder %s12, 0
    %p74 = por %p72, %p73
    %p75 = scmp.ne.s32.totalorder %s67, %s69
    %p76 = scmp.eq.s32.totalorder %s17, 1
    %p77 = por %p75, %p76
    %p78 = scmp.ne.s32.totalorder %s69, %s70
    %p79 = scmp.eq.s32.totalorder %s17, 0
    %p80 = por %p78, %p79
    %p81 = scmp.ne.s32.totalorder %s69, %s70
    %p82 = scmp.eq.s32.totalorder %s18, 1
    %p83 = por %p81, %p82
    %p85 = scmp.ne.s32.totalorder %s70, %s84
    %p86 = scmp.eq.s32.totalorder %s18, 0
    %p87 = por %p85, %p86
    %s89 = sadd.s32 %s88, 1
    %p92 = scmp.eq.s32.totalorder %s12, 1
    %p93 = scmp.ne.s32.totalorder %s88, %s90
    %p94 = scmp.eq.s32.totalorder %s12, 0
    %p95 = por %p93, %p94
    %p96 = scmp.ne.s32.totalorder %s88, %s90
    %p97 = scmp.eq.s32.totalorder %s17, 1
    %p98 = por %p96, %p97
    %p99 = scmp.ne.s32.totalorder %s90, %s91
    %p100 = scmp.eq.s32.totalorder %s17, 0
    %p101 = por %p99, %p100
    %p102 = scmp.ne.s32.totalorder %s90, %s91
    %p103 = scmp.eq.s32.totalorder %s18, 1
    %p104 = por %p102, %p103
    %p106 = scmp.ne.s32.totalorder %s91, %s105
    %p107 = scmp.eq.s32.totalorder %s18, 0
    %p108 = por %p106, %p107
    %s109 = ssub.s32 %s12, %s19
    %p110 = scmp.eq.s32.totalorder %s109, 0
    %s112 = sadd.s32 %s111, 1
    %s113 = scalar_select %p110, %s111, %s112
    %p116 = pneg %p110
    %p117 = scmp.eq.s32.totalorder %s12, 1
    %p118 = por %p116, %p117
    %p119 = scmp.ne.s32.totalorder %s111, %s114
    %p120 = scmp.eq.s32.totalorder %s12, 0
    %p121 = por %p119, %p120
    %p122 = scmp.ne.s32.totalorder %s111, %s114
    %p123 = scmp.eq.s32.totalorder %s17, 1
    %p124 = por %p122, %p123
    %p125 = scmp.ne.s32.totalorder %s114, %s115
    %p126 = scmp.eq.s32.totalorder %s17, 0
    %p127 = por %p125, %p126
    %p128 = scmp.ne.s32.totalorder %s114, %s115
    %p129 = scmp.eq.s32.totalorder %s18, 1
    %p130 = por %p128, %p129
    %p132 = scmp.ne.s32.totalorder %s115, %s131
    %p133 = scmp.eq.s32.totalorder %s18, 0
    %p134 = por %p132, %p133
    %s135 = ssub.s32 %s12, %s19
    %p136 = scmp.eq.s32.totalorder %s135, 0
    %s138 = sadd.s32 %s137, 1
    %s139 = scalar_select %p136, %s137, %s138
    %p142 = pneg %p136
    %p143 = scmp.eq.s32.totalorder %s12, 1
    %p144 = por %p142, %p143
    %p145 = scmp.ne.s32.totalorder %s137, %s140
    %p146 = scmp.eq.s32.totalorder %s12, 0
    %p147 = por %p145, %p146
    %p148 = scmp.ne.s32.totalorder %s137, %s140
    %p149 = scmp.eq.s32.totalorder %s17, 1
    %p150 = por %p148, %p149
    %p151 = scmp.ne.s32.totalorder %s140, %s141
    %p152 = scmp.eq.s32.totalorder %s17, 0
    %p153 = por %p151, %p152
    %p154 = scmp.ne.s32.totalorder %s140, %s141
    %p155 = scmp.eq.s32.totalorder %s18, 1
    %p156 = por %p154, %p155
    %p158 = scmp.ne.s32.totalorder %s141, %s157
    %p159 = scmp.eq.s32.totalorder %s18, 0
    %p160 = por %p158, %p159
    %p161 = scmp.le.s32.totalorder 1, %s12
    %p162 = scmp.lt.s32.totalorder %s12, 3
    %p163 = pnand %p161, %p162
    %p164 = pneg %p163
    // Predicated region
    $region9: #{zpzp_forward.1} parent=5 // pred_check
      _
    $region10: #{zpzp_forward.1} parent=5 // pred_check_branch
      %166 = sbr.rel (%p163) target = $region12
    $region11: #{zpzp_forward.1} parent=5 // pred_region
      %s167 = ssub.s32 %s12, 1
      // Predicated region
      $region13: #{zpzp_forward.1} parent=11 // pred_check
        %p168 = pneg %p59
      $region14: #{zpzp_forward.1} parent=11 // pred_check_branch
        %170 = sbr.rel (%p168) target = $region16
      $region15: #{zpzp_forward.1} parent=11 // pred_region
        _
      $region16: #{zpzp_forward.1} parent=11 // pred_fallthru
        _
      // Predicated region
      $region17: #{zpzp_forward.1} parent=11 // pred_check
        %p171 = pneg %p80
      $region18: #{zpzp_forward.1} parent=11 // pred_check_branch
        %173 = sbr.rel (%p171) target = $region20
      $region19: #{zpzp_forward.1} parent=11 // pred_region
        _
      $region20: #{zpzp_forward.1} parent=11 // pred_fallthru
        _
      // Predicated region
      $region21: #{zpzp_forward.1} parent=11 // pred_check
        %p174 = pneg %p101
      $region22: #{zpzp_forward.1} parent=11 // pred_check_branch
        %176 = sbr.rel (%p174) target = $region24
      $region23: #{zpzp_forward.1} parent=11 // pred_region
        _
      $region24: #{zpzp_forward.1} parent=11 // pred_fallthru
        _
    $region12: #{zpzp_forward.1} parent=5 // pred_fallthru
      _
    %p177 = scmp.lt.s32.totalorder %s12, 2
    // Predicated region
    $region25: #{zpzp_forward.1} parent=5 // pred_check
      %p178 = pneg %p177
    $region26: #{zpzp_forward.1} parent=5 // pred_check_branch
      %180 = sbr.rel (%p178) target = $region28
    $region27: #{zpzp_forward.1} parent=5 // pred_region
      // Predicated region
      $region29: #{zpzp_forward.1} parent=27 // pred_check
        %p181 = pneg %p32
      $region30: #{zpzp_forward.1} parent=27 // pred_check_branch
        %183 = sbr.rel (%p181) target = $region32
      $region31: #{zpzp_forward.1} parent=27 // pred_region
        %p184 = scmp.lt.s32.totalorder %s12, 1
        %s185 = scalar_select %p184, %s12, 1
        %s186 = smul.addr %s185, 5
        %s187 = scalar_lea.vmem %s0, %s186
      $region32: #{zpzp_forward.1} parent=27 // pred_fallthru
        _
    $region28: #{zpzp_forward.1} parent=5 // pred_fallthru
      _
    %p188 = scmp.le.s32.totalorder 1, %s12
    %p189 = scmp.lt.s32.totalorder %s12, 3
    %p190 = pnand %p188, %p189
    %p191 = pneg %p190
    // Predicated region
    $region33: #{zpzp_forward.1} parent=5 // pred_check
      _
    $region34: #{zpzp_forward.1} parent=5 // pred_check_branch
      %193 = sbr.rel (%p190) target = $region36
    $region35: #{zpzp_forward.1} parent=5 // pred_region
      %s194 = ssub.s32 %s12, 1
      %p195 = scmp.lt.s32.totalorder %s17, 1
      %s196 = scalar_select %p195, %s17, 1
      %s197 = smul.addr %s196, 5
      %s198 = scalar_lea.vmem %s0, %s197
      %p199 = pneg %p38
      %p200 = pneg %p35
      %p201 = pneg %p59
      %p202 = pneg %p56
      %p203 = pneg %p80
      %p204 = pneg %p77
      %p205 = pneg %p101
      %p206 = pneg %p98
      %p207 = pneg %p127
      %p208 = pneg %p124
      %p209 = scmp.lt.s32.totalorder %s17, 1
      %s210 = scalar_select %p209, %s17, 1
      %s211 = smul.addr %s210, 12
      %s212 = smul.addr %s211, 8
      %s213 = scalar_lea.vmem %s4, %s212
      %p214 = pneg %p153
      %p215 = pneg %p150
      %p216 = scmp.lt.s32.totalorder %s17, 1
      %s217 = scalar_select %p216, %s17, 1
      %s218 = smul.addr %s217, 3
      %s219 = scalar_lea.vmem %s5, %s218
      %p220 = scmp.lt.s32.totalorder %s17, 1
      %s221 = scalar_select %p220, %s17, 1
      %s222 = smul.addr %s221, 5
      %s223 = scalar_lea.vmem %s0, %s222
      %p224 = scmp.lt.s32.totalorder %s17, 1
      %s225 = scalar_select %p224, %s17, 1
      %s226 = smul.addr %s225, 12
      %s227 = smul.addr %s226, 8
      %s228 = scalar_lea.vmem %s4, %s227
      %p229 = scmp.lt.s32.totalorder %s17, 1
      %s230 = scalar_select %p229, %s17, 1
      %s231 = smul.addr %s230, 3
      %s232 = scalar_lea.vmem %s5, %s231
      %v234 = vld [vmem:[%s223] sm:$0x1f]
      %235 = vst [vmem:[#allocation2 + $0x90] sm:$0xff] 0.0
      %236 = vst [vmem:[#allocation2 + $0x98] sm:$0xff] 0.0
      %237 = vst [vmem:[#allocation2 + $0xa0] sm:$0xff] 0.0
      %238 = vst [vmem:[#allocation2 + $0xa8] sm:$0xff] 0.0
      %239 = vst [vmem:[#allocation2 + $0xb0] sm:$0xff] 0.0
      %240 = vst [vmem:[#allocation2 + $0xb8] sm:$0xff] 0.0
      %v241 = vlaneseq
      %vm242 = vcmp.ge.s32.totalorder %v241, 0
      %vm243 = vcmp.lt.s32.totalorder %v241, 384
      %vm244 = vmand %vm242, %vm243
      %245 = vst.msk [vmem:[#allocation2] ss:$8 sm:$0x7] %vm244, %v234
      %246 = vst.msk [vmem:[#allocation2] ss:$8 sm:$0x0] %vm244, %v234
      %248 = vrot.lane.b32.xlu0 %v234, 127
      %v249 = vpop.permute.xlu0 %248
      %v250 = vrot.slane %v249, 1
      %vm251 = vcmask 1039360
      %v252 = vsel %vm251, %v249, %v250
      %s254 = scalar_lea.vmem [#allocation2], 1
      %255 = vst.msk [vmem:[%s254] ss:$8 sm:$0x7] %vm244, %v252
      %256 = vst.msk [vmem:[%s254] ss:$8 sm:$0x0] %vm244, %v252
      %257 = vrot.lane.b32.xlu0 %v234, 126
      %v258 = vpop.permute.xlu0 %257
      %v259 = vrot.slane %v258, 1
      %vm260 = vcmask 1031168
      %v261 = vsel %vm260, %v258, %v259
      %s263 = scalar_lea.vmem [#allocation2], 2
      %264 = vst.msk [vmem:[%s263] ss:$8 sm:$0x7] %vm244, %v261
      %265 = vst.msk [vmem:[%s263] ss:$8 sm:$0x0] %vm244, %v261
      %266 = vrot.lane.b32.xlu0 %v234, 125
      %v267 = vpop.permute.xlu0 %266
      %v268 = vrot.slane %v267, 1
      %vm269 = vcmask 1022976
      %v270 = vsel %vm269, %v267, %v268
      %s272 = scalar_lea.vmem [#allocation2], 3
      %273 = vst.msk [vmem:[%s272] ss:$8 sm:$0x7] %vm244, %v270
      %274 = vst.msk [vmem:[%s272] ss:$8 sm:$0x0] %vm244, %v270
      %275 = vrot.lane.b32.xlu0 %v234, 124
      %v276 = vpop.permute.xlu0 %275
      %v277 = vrot.slane %v276, 1
      %vm278 = vcmask 1014784
      %v279 = vsel %vm278, %v276, %v277
      %s281 = scalar_lea.vmem [#allocation2], 4
      %282 = vst.msk [vmem:[%s281] ss:$8 sm:$0x7] %vm244, %v279
      %283 = vst.msk [vmem:[%s281] ss:$8 sm:$0x0] %vm244, %v279
      %284 = vrot.lane.b32.xlu0 %v234, 123
      %v285 = vpop.permute.xlu0 %284
      %v286 = vrot.slane %v285, 1
      %vm287 = vcmask 1006592
      %v288 = vsel %vm287, %v285, %v286
      %s290 = scalar_lea.vmem [#allocation2], 5
      %291 = vst.msk [vmem:[%s290] ss:$8 sm:$0x7] %vm244, %v288
      %292 = vst.msk [vmem:[%s290] ss:$8 sm:$0x0] %vm244, %v288
      %293 = vrot.lane.b32.xlu0 %v234, 122
      %v294 = vpop.permute.xlu0 %293
      %v295 = vrot.slane %v294, 1
      %vm296 = vcmask 998400
      %v297 = vsel %vm296, %v294, %v295
      %s299 = scalar_lea.vmem [#allocation2], 6
      %300 = vst.msk [vmem:[%s299] ss:$8 sm:$0x7] %vm244, %v297
      %301 = vst.msk [vmem:[%s299] ss:$8 sm:$0x0] %vm244, %v297
      %302 = vrot.lane.b32.xlu0 %v234, 104
      %v303 = vpop.permute.xlu0 %302
      %v304 = vrot.slane %v303, 1
      %vm305 = vcmask 850944
      %v306 = vsel %vm305, %v303, %v304
      %s308 = scalar_lea.vmem [#allocation2], 7
      %309 = vst.msk [vmem:[%s308] ss:$8 sm:$0x7] %vm244, %v306
      %310 = vst.msk [vmem:[%s308] ss:$8 sm:$0x0] %vm244, %v306
      %311 = vrot.lane.b32.xlu0 %v234, 103
      %v312 = vpop.permute.xlu0 %311
      %v313 = vrot.slane %v312, 1
      %vm314 = vcmask 842752
      %v315 = vsel %vm314, %v312, %v313
      %s317 = scalar_lea.vmem [#allocation2], 24
      %318 = vst.msk [vmem:[%s317] ss:$8 sm:$0x7] %vm244, %v315
      %319 = vst.msk [vmem:[%s317] ss:$8 sm:$0x0] %vm244, %v315
      %320 = vrot.lane.b32.xlu0 %v234, 102
      %v321 = vpop.permute.xlu0 %320
      %v322 = vrot.slane %v321, 1
      %vm323 = vcmask 834560
      %v324 = vsel %vm323, %v321, %v322
      %s326 = scalar_lea.vmem [#allocation2], 25
      %327 = vst.msk [vmem:[%s326] ss:$8 sm:$0x7] %vm244, %v324
      %328 = vst.msk [vmem:[%s326] ss:$8 sm:$0x0] %vm244, %v324
      %329 = vrot.lane.b32.xlu0 %v234, 101
      %v330 = vpop.permute.xlu0 %329
      %v331 = vrot.slane %v330, 1
      %vm332 = vcmask 826368
      %v333 = vsel %vm332, %v330, %v331
      %s335 = scalar_lea.vmem [#allocation2], 26
      %336 = vst.msk [vmem:[%s335] ss:$8 sm:$0x7] %vm244, %v333
      %337 = vst.msk [vmem:[%s335] ss:$8 sm:$0x0] %vm244, %v333
      %338 = vrot.lane.b32.xlu0 %v234, 100
      %v339 = vpop.permute.xlu0 %338
      %v340 = vrot.slane %v339, 1
      %vm341 = vcmask 818176
      %v342 = vsel %vm341, %v339, %v340
      %s344 = scalar_lea.vmem [#allocation2], 27
      %345 = vst.msk [vmem:[%s344] ss:$8 sm:$0x7] %vm244, %v342
      %346 = vst.msk [vmem:[%s344] ss:$8 sm:$0x0] %vm244, %v342
      %347 = vrot.lane.b32.xlu0 %v234, 99
      %v348 = vpop.permute.xlu0 %347
      %v349 = vrot.slane %v348, 1
      %vm350 = vcmask 809984
      %v351 = vsel %vm350, %v348, %v349
      %s353 = scalar_lea.vmem [#allocation2], 28
      %354 = vst.msk [vmem:[%s353] ss:$8 sm:$0x7] %vm244, %v351
      %355 = vst.msk [vmem:[%s353] ss:$8 sm:$0x0] %vm244, %v351
      %356 = vrot.lane.b32.xlu0 %v234, 98
      %v357 = vpop.permute.xlu0 %356
      %v358 = vrot.slane %v357, 1
      %vm359 = vcmask 801792
      %v360 = vsel %vm359, %v357, %v358
      %s362 = scalar_lea.vmem [#allocation2], 29
      %363 = vst.msk [vmem:[%s362] ss:$8 sm:$0x7] %vm244, %v360
      %364 = vst.msk [vmem:[%s362] ss:$8 sm:$0x0] %vm244, %v360
      %365 = vrot.lane.b32.xlu0 %v234, 80
      %v366 = vpop.permute.xlu0 %365
      %v367 = vrot.slane %v366, 1
      %vm368 = vcmask 654336
      %v369 = vsel %vm368, %v366, %v367
      %s371 = scalar_lea.vmem [#allocation2], 30
      %372 = vst.msk [vmem:[%s371] ss:$8 sm:$0x7] %vm244, %v369
      %373 = vst.msk [vmem:[%s371] ss:$8 sm:$0x0] %vm244, %v369
      %374 = vrot.lane.b32.xlu0 %v234, 79
      %v375 = vpop.permute.xlu0 %374
      %v376 = vrot.slane %v375, 1
      %vm377 = vcmask 646144
      %v378 = vsel %vm377, %v375, %v376
      %s380 = scalar_lea.vmem [#allocation2], 31
      %381 = vst.msk [vmem:[%s380] ss:$8 sm:$0x7] %vm244, %v378
      %382 = vst.msk [vmem:[%s380] ss:$8 sm:$0x0] %vm244, %v378
      %383 = vrot.lane.b32.xlu0 %v234, 78
      %v384 = vpop.permute.xlu0 %383
      %v385 = vrot.slane %v384, 1
      %vm386 = vcmask 637952
      %v387 = vsel %vm386, %v384, %v385
      %s389 = scalar_lea.vmem [#allocation2], 48
      %390 = vst.msk [vmem:[%s389] ss:$8 sm:$0x7] %vm244, %v387
      %391 = vst.msk [vmem:[%s389] ss:$8 sm:$0x0] %vm244, %v387
      %392 = vrot.lane.b32.xlu0 %v234, 77
      %v393 = vpop.permute.xlu0 %392
      %v394 = vrot.slane %v393, 1
      %vm395 = vcmask 629760
      %v396 = vsel %vm395, %v393, %v394
      %s398 = scalar_lea.vmem [#allocation2], 49
      %399 = vst.msk [vmem:[%s398] ss:$8 sm:$0x7] %vm244, %v396
      %400 = vst.msk [vmem:[%s398] ss:$8 sm:$0x0] %vm244, %v396
      %401 = vrot.lane.b32.xlu0 %v234, 76
      %v402 = vpop.permute.xlu0 %401
      %v403 = vrot.slane %v402, 1
      %vm404 = vcmask 621568
      %v405 = vsel %vm404, %v402, %v403
      %s407 = scalar_lea.vmem [#allocation2], 50
      %408 = vst.msk [vmem:[%s407] ss:$8 sm:$0x7] %vm244, %v405
      %409 = vst.msk [vmem:[%s407] ss:$8 sm:$0x0] %vm244, %v405
      %410 = vrot.lane.b32.xlu0 %v234, 75
      %v411 = vpop.permute.xlu0 %410
      %v412 = vrot.slane %v411, 1
      %vm413 = vcmask 613376
      %v414 = vsel %vm413, %v411, %v412
      %s416 = scalar_lea.vmem [#allocation2], 51
      %417 = vst.msk [vmem:[%s416] ss:$8 sm:$0x7] %vm244, %v414
      %418 = vst.msk [vmem:[%s416] ss:$8 sm:$0x0] %vm244, %v414
      %419 = vrot.lane.b32.xlu0 %v234, 74
      %v420 = vpop.permute.xlu0 %419
      %v421 = vrot.slane %v420, 1
      %vm422 = vcmask 605184
      %v423 = vsel %vm422, %v420, %v421
      %s425 = scalar_lea.vmem [#allocation2], 52
      %426 = vst.msk [vmem:[%s425] ss:$8 sm:$0x7] %vm244, %v423
      %427 = vst.msk [vmem:[%s425] ss:$8 sm:$0x0] %vm244, %v423
      %428 = vrot.lane.b32.xlu0 %v234, 56
      %v429 = vpop.permute.xlu0 %428
      %v430 = vrot.slane %v429, 1
      %vm431 = vcmask 457728
      %v432 = vsel %vm431, %v429, %v430
      %s434 = scalar_lea.vmem [#allocation2], 53
      %435 = vst.msk [vmem:[%s434] ss:$8 sm:$0x7] %vm244, %v432
      %436 = vst.msk [vmem:[%s434] ss:$8 sm:$0x0] %vm244, %v432
      %437 = vrot.lane.b32.xlu0 %v234, 55
      %v438 = vpop.permute.xlu0 %437
      %v439 = vrot.slane %v438, 1
      %vm440 = vcmask 449536
      %v441 = vsel %vm440, %v438, %v439
      %s443 = scalar_lea.vmem [#allocation2], 54
      %444 = vst.msk [vmem:[%s443] ss:$8 sm:$0x7] %vm244, %v441
      %445 = vst.msk [vmem:[%s443] ss:$8 sm:$0x0] %vm244, %v441
      %446 = vrot.lane.b32.xlu0 %v234, 54
      %v447 = vpop.permute.xlu0 %446
      %v448 = vrot.slane %v447, 1
      %vm449 = vcmask 441344
      %v450 = vsel %vm449, %v447, %v448
      %s452 = scalar_lea.vmem [#allocation2], 55
      %453 = vst.msk [vmem:[%s452] ss:$8 sm:$0x7] %vm244, %v450
      %454 = vst.msk [vmem:[%s452] ss:$8 sm:$0x0] %vm244, %v450
      %455 = vrot.lane.b32.xlu0 %v234, 53
      %v456 = vpop.permute.xlu0 %455
      %v457 = vrot.slane %v456, 1
      %vm458 = vcmask 433152
      %v459 = vsel %vm458, %v456, %v457
      %s461 = scalar_lea.vmem [#allocation2], 72
      %462 = vst.msk [vmem:[%s461] ss:$8 sm:$0x7] %vm244, %v459
      %463 = vst.msk [vmem:[%s461] ss:$8 sm:$0x0] %vm244, %v459
      %464 = vrot.lane.b32.xlu0 %v234, 52
      %v465 = vpop.permute.xlu0 %464
      %v466 = vrot.slane %v465, 1
      %vm467 = vcmask 424960
      %v468 = vsel %vm467, %v465, %v466
      %s470 = scalar_lea.vmem [#allocation2], 73
      %471 = vst.msk [vmem:[%s470] ss:$8 sm:$0x7] %vm244, %v468
      %472 = vst.msk [vmem:[%s470] ss:$8 sm:$0x0] %vm244, %v468
      %473 = vrot.lane.b32.xlu0 %v234, 51
      %v474 = vpop.permute.xlu0 %473
      %v475 = vrot.slane %v474, 1
      %vm476 = vcmask 416768
      %v477 = vsel %vm476, %v474, %v475
      %s479 = scalar_lea.vmem [#allocation2], 74
      %480 = vst.msk [vmem:[%s479] ss:$8 sm:$0x7] %vm244, %v477
      %481 = vst.msk [vmem:[%s479] ss:$8 sm:$0x0] %vm244, %v477
      %482 = vrot.lane.b32.xlu0 %v234, 50
      %v483 = vpop.permute.xlu0 %482
      %v484 = vrot.slane %v483, 1
      %vm485 = vcmask 408576
      %v486 = vsel %vm485, %v483, %v484
      %s488 = scalar_lea.vmem [#allocation2], 75
      %489 = vst.msk [vmem:[%s488] ss:$8 sm:$0x7] %vm244, %v486
      %490 = vst.msk [vmem:[%s488] ss:$8 sm:$0x0] %vm244, %v486
      %491 = vrot.lane.b32.xlu0 %v234, 32
      %v492 = vpop.permute.xlu0 %491
      %v493 = vrot.slane %v492, 1
      %vm494 = vcmask 261120
      %v495 = vsel %vm494, %v492, %v493
      %s497 = scalar_lea.vmem [#allocation2], 76
      %498 = vst.msk [vmem:[%s497] ss:$8 sm:$0x7] %vm244, %v495
      %499 = vst.msk [vmem:[%s497] ss:$8 sm:$0x0] %vm244, %v495
      %500 = vrot.lane.b32.xlu0 %v234, 31
      %v501 = vpop.permute.xlu0 %500
      %v502 = vrot.slane %v501, 1
      %vm503 = vcmask 252928
      %v504 = vsel %vm503, %v501, %v502
      %s506 = scalar_lea.vmem [#allocation2], 77
      %507 = vst.msk [vmem:[%s506] ss:$8 sm:$0x7] %vm244, %v504
      %508 = vst.msk [vmem:[%s506] ss:$8 sm:$0x0] %vm244, %v504
      %509 = vrot.lane.b32.xlu0 %v234, 30
      %v510 = vpop.permute.xlu0 %509
      %v511 = vrot.slane %v510, 1
      %vm512 = vcmask 244736
      %v513 = vsel %vm512, %v510, %v511
      %s515 = scalar_lea.vmem [#allocation2], 78
      %516 = vst.msk [vmem:[%s515] ss:$8 sm:$0x7] %vm244, %v513
      %517 = vst.msk [vmem:[%s515] ss:$8 sm:$0x0] %vm244, %v513
      %518 = vrot.lane.b32.xlu0 %v234, 29
      %v519 = vpop.permute.xlu0 %518
      %v520 = vrot.slane %v519, 1
      %vm521 = vcmask 236544
      %v522 = vsel %vm521, %v519, %v520
      %s524 = scalar_lea.vmem [#allocation2], 79
      %525 = vst.msk [vmem:[%s524] ss:$8 sm:$0x7] %vm244, %v522
      %526 = vst.msk [vmem:[%s524] ss:$8 sm:$0x0] %vm244, %v522
      %527 = vrot.lane.b32.xlu0 %v234, 28
      %v528 = vpop.permute.xlu0 %527
      %v529 = vrot.slane %v528, 1
      %vm530 = vcmask 228352
      %v531 = vsel %vm530, %v528, %v529
      %s533 = scalar_lea.vmem [#allocation2], 96
      %534 = vst.msk [vmem:[%s533] ss:$8 sm:$0x7] %vm244, %v531
      %535 = vst.msk [vmem:[%s533] ss:$8 sm:$0x0] %vm244, %v531
      %536 = vrot.lane.b32.xlu0 %v234, 27
      %v537 = vpop.permute.xlu0 %536
      %v538 = vrot.slane %v537, 1
      %vm539 = vcmask 220160
      %v540 = vsel %vm539, %v537, %v538
      %s542 = scalar_lea.vmem [#allocation2], 97
      %543 = vst.msk [vmem:[%s542] ss:$8 sm:$0x7] %vm244, %v540
      %544 = vst.msk [vmem:[%s542] ss:$8 sm:$0x0] %vm244, %v540
      %545 = vrot.lane.b32.xlu0 %v234, 26
      %v546 = vpop.permute.xlu0 %545
      %v547 = vrot.slane %v546, 1
      %vm548 = vcmask 211968
      %v549 = vsel %vm548, %v546, %v547
      %s551 = scalar_lea.vmem [#allocation2], 98
      %552 = vst.msk [vmem:[%s551] ss:$8 sm:$0x7] %vm244, %v549
      %553 = vst.msk [vmem:[%s551] ss:$8 sm:$0x0] %vm244, %v549
      %554 = vrot.lane.b32.xlu0 %v234, 8
      %v555 = vpop.permute.xlu0 %554
      %v556 = vrot.slane %v555, 1
      %vm557 = vcmask 64512
      %v558 = vsel %vm557, %v555, %v556
      %s560 = scalar_lea.vmem [#allocation2], 99
      %561 = vst.msk [vmem:[%s560] ss:$8 sm:$0x7] %vm244, %v558
      %562 = vst.msk [vmem:[%s560] ss:$8 sm:$0x0] %vm244, %v558
      %563 = vrot.lane.b32.xlu0 %v234, 7
      %v564 = vpop.permute.xlu0 %563
      %v565 = vrot.slane %v564, 1
      %vm566 = vcmask 56320
      %v567 = vsel %vm566, %v564, %v565
      %s569 = scalar_lea.vmem [#allocation2], 100
      %570 = vst.msk [vmem:[%s569] ss:$8 sm:$0x7] %vm244, %v567
      %571 = vst.msk [vmem:[%s569] ss:$8 sm:$0x0] %vm244, %v567
      %572 = vrot.lane.b32.xlu0 %v234, 6
      %v573 = vpop.permute.xlu0 %572
      %v574 = vrot.slane %v573, 1
      %vm575 = vcmask 48128
      %v576 = vsel %vm575, %v573, %v574
      %s578 = scalar_lea.vmem [#allocation2], 101
      %579 = vst.msk [vmem:[%s578] ss:$8 sm:$0x7] %vm244, %v576
      %580 = vst.msk [vmem:[%s578] ss:$8 sm:$0x0] %vm244, %v576
      %581 = vrot.lane.b32.xlu0 %v234, 5
      %v582 = vpop.permute.xlu0 %581
      %v583 = vrot.slane %v582, 1
      %vm584 = vcmask 39936
      %v585 = vsel %vm584, %v582, %v583
      %s587 = scalar_lea.vmem [#allocation2], 102
      %588 = vst.msk [vmem:[%s587] ss:$8 sm:$0x7] %vm244, %v585
      %589 = vst.msk [vmem:[%s587] ss:$8 sm:$0x0] %vm244, %v585
      %590 = vrot.lane.b32.xlu0 %v234, 4
      %v591 = vpop.permute.xlu0 %590
      %v592 = vrot.slane %v591, 1
      %vm593 = vcmask 31744
      %v594 = vsel %vm593, %v591, %v592
      %s596 = scalar_lea.vmem [#allocation2], 103
      %597 = vst.msk [vmem:[%s596] ss:$8 sm:$0x7] %vm244, %v594
      %598 = vst.msk [vmem:[%s596] ss:$8 sm:$0x0] %vm244, %v594
      %599 = vrot.lane.b32.xlu0 %v234, 3
      %v600 = vpop.permute.xlu0 %599
      %v601 = vrot.slane %v600, 1
      %vm602 = vcmask 23552
      %v603 = vsel %vm602, %v600, %v601
      %s605 = scalar_lea.vmem [#allocation2], 120
      %606 = vst.msk [vmem:[%s605] ss:$8 sm:$0x7] %vm244, %v603
      %607 = vst.msk [vmem:[%s605] ss:$8 sm:$0x0] %vm244, %v603
      %608 = vrot.lane.b32.xlu0 %v234, 2
      %v609 = vpop.permute.xlu0 %608
      %v610 = vrot.slane %v609, 1
      %vm611 = vcmask 15360
      %v612 = vsel %vm611, %v609, %v610
      %s614 = scalar_lea.vmem [#allocation2], 121
      %615 = vst.msk [vmem:[%s614] ss:$8 sm:$0x7] %vm244, %v612
      %616 = vst.msk [vmem:[%s614] ss:$8 sm:$0x0] %vm244, %v612
      %617 = vrot.lane.b32.xlu0 %v234, 112
      %v618 = vpop.permute.xlu0 %617
      %v619 = vrot.slane %v618, 1
      %v620 = vrot.slane %v618, 2
      %vm621 = vcmask 916480
      %v622 = vsel %vm621, %v619, %v620
      %s624 = scalar_lea.vmem [#allocation2], 122
      %625 = vst.msk [vmem:[%s624] ss:$8 sm:$0x7] %vm244, %v622
      %626 = vst.msk [vmem:[%s624] ss:$8 sm:$0x0] %vm244, %v622
      %627 = vrot.lane.b32.xlu0 %v234, 111
      %v628 = vpop.permute.xlu0 %627
      %v629 = vrot.slane %v628, 1
      %v630 = vrot.slane %v628, 2
      %vm631 = vcmask 908288
      %v632 = vsel %vm631, %v629, %v630
      %s634 = scalar_lea.vmem [#allocation2], 123
      %635 = vst.msk [vmem:[%s634] ss:$8 sm:$0x7] %vm244, %v632
      %636 = vst.msk [vmem:[%s634] ss:$8 sm:$0x0] %vm244, %v632
      %637 = vrot.lane.b32.xlu0 %v234, 110
      %v638 = vpop.permute.xlu0 %637
      %v639 = vrot.slane %v638, 1
      %v640 = vrot.slane %v638, 2
      %vm641 = vcmask 900096
      %v642 = vsel %vm641, %v639, %v640
      %s644 = scalar_lea.vmem [#allocation2], 124
      %645 = vst.msk [vmem:[%s644] ss:$8 sm:$0x7] %vm244, %v642
      %646 = vst.msk [vmem:[%s644] ss:$8 sm:$0x0] %vm244, %v642
      %647 = vrot.lane.b32.xlu0 %v234, 109
      %v648 = vpop.permute.xlu0 %647
      %v649 = vrot.slane %v648, 1
      %v650 = vrot.slane %v648, 2
      %vm651 = vcmask 891904
      %v652 = vsel %vm651, %v649, %v650
      %s654 = scalar_lea.vmem [#allocation2], 125
      %655 = vst.msk [vmem:[%s654] ss:$8 sm:$0x7] %vm244, %v652
      %656 = vst.msk [vmem:[%s654] ss:$8 sm:$0x0] %vm244, %v652
      %657 = vrot.lane.b32.xlu0 %v234, 108
      %v658 = vpop.permute.xlu0 %657
      %v659 = vrot.slane %v658, 1
      %v660 = vrot.slane %v658, 2
      %vm661 = vcmask 883712
      %v662 = vsel %vm661, %v659, %v660
      %s664 = scalar_lea.vmem [#allocation2], 126
      %665 = vst.msk [vmem:[%s664] ss:$8 sm:$0x7] %vm244, %v662
      %666 = vst.msk [vmem:[%s664] ss:$8 sm:$0x0] %vm244, %v662
      %667 = vrot.lane.b32.xlu0 %v234, 107
      %v668 = vpop.permute.xlu0 %667
      %v669 = vrot.slane %v668, 1
      %v670 = vrot.slane %v668, 2
      %vm671 = vcmask 875520
      %v672 = vsel %vm671, %v669, %v670
      %s674 = scalar_lea.vmem [#allocation2], 127
      %675 = vst.msk [vmem:[%s674] ss:$8 sm:$0x7] %vm244, %v672
      %676 = vst.msk [vmem:[%s674] ss:$8 sm:$0x0] %vm244, %v672
      %677 = vrot.lane.b32.xlu0 %v234, 106
      %v678 = vpop.permute.xlu0 %677
      %v679 = vrot.slane %v678, 1
      %v680 = vrot.slane %v678, 2
      %vm681 = vcmask 867328
      %v682 = vsel %vm681, %v679, %v680
      %s684 = scalar_lea.vmem [#allocation2], 144
      %685 = vst.msk [vmem:[%s684] ss:$8 sm:$0x7] %vm244, %v682
      %686 = vst.msk [vmem:[%s684] ss:$8 sm:$0x0] %vm244, %v682
      %v687 = vld [vmem:[%s3] sm:$0x7]
      %v688 = vld [vmem:[%s1] sm:$0xf]
      %v689 = vld [vmem:[%s1 + $0x4] sm:$0xf]
      %v690 = vld [vmem:[%s1 + $0x8] sm:$0xf]
      %v691 = vld [vmem:[%s1 + $0xc] sm:$0xf]
      %v692 = vld [vmem:[#allocation2] sm:$0xff]
      %v693 = vld [vmem:[#allocation2 + $0x8] sm:$0xff]
      %v694 = vld [vmem:[#allocation2 + $0x10] sm:$0xff]
      %v695 = vld [vmem:[#allocation2 + $0x18] sm:$0xff]
      %v696 = vld [vmem:[#allocation2 + $0x20] sm:$0xff]
      %v697 = vld [vmem:[#allocation2 + $0x28] sm:$0xff]
      %v698 = vld [vmem:[#allocation2 + $0x30] sm:$0xff]
      %v699 = vld [vmem:[#allocation2 + $0x38] sm:$0xff]
      %v700 = vld [vmem:[#allocation2 + $0x40] sm:$0xff]
      %v701 = vld [vmem:[#allocation2 + $0x48] sm:$0xff]
      %v702 = vld [vmem:[#allocation2 + $0x50] sm:$0xff]
      %v703 = vld [vmem:[#allocation2 + $0x58] sm:$0xff]
      %v704 = vld [vmem:[#allocation2 + $0x60] sm:$0xff]
      %v705 = vld [vmem:[#allocation2 + $0x68] sm:$0xff]
      %v706 = vld [vmem:[#allocation2 + $0x70] sm:$0xff]
      %v707 = vld [vmem:[#allocation2 + $0x78] sm:$0xff]
      %v708 = vld [vmem:[#allocation2 + $0x80] sm:$0xff]
      %v709 = vld [vmem:[#allocation2 + $0x88] sm:$0xff]
      %v710 = vld [vmem:[#allocation2 + $0x90] sm:$0xff]
      %v711 = vld [vmem:[#allocation2 + $0x98] sm:$0xff]
      %v712 = vld [vmem:[#allocation2 + $0xa0] sm:$0xff]
      %v713 = vld [vmem:[#allocation2 + $0xa8] sm:$0xff]
      %v714 = vld [vmem:[#allocation2 + $0xb0] sm:$0xff]
      %v715 = vld [vmem:[#allocation2 + $0xb8] sm:$0xff]
      %v716 = vpack.c.bf16 %v695, %v692
      %v717 = vpack.c.bf16 %v696, %v693
      %v718 = vpack.c.bf16 %v697, %v694
      %v719 = vpack.c.bf16 %v701, %v698
      %v720 = vpack.c.bf16 %v702, %v699
      %v721 = vpack.c.bf16 %v703, %v700
      %v722 = vpack.c.bf16 %v707, %v704
      %v723 = vpack.c.bf16 %v708, %v705
      %v724 = vpack.c.bf16 %v709, %v706
      %v725 = vpack.c.bf16 %v713, %v710
      %v726 = vpack.c.bf16 %v714, %v711
      %v727 = vpack.c.bf16 %v715, %v712
      %v732 = vunpack.c.l.b16 %v688
      %v733 = vunpack.c.l.b16 %v689
      %v734 = vunpack.c.l.b16 %v690
      %v735 = vunpack.c.l.b16 %v691
      %v736 = vpack.c.b16 %v733, %v732
      %v737 = vpack.c.b16 %v735, %v734
      %vm738 = vcmask 523264
      %v740 = vsel %vm738, %v736, 0
      %v743 = vsel %vm738, %v737, 0
      %745 = vmatprep.subr.bf16.mxu0 %v717
      %746 = vmatpush1.bf16.msra.mxu0 %v716
      %747 = vmatprep.subr.bf16.mxu0 %v720
      %748 = vmatpush1.bf16.msra.mxu0 %v719
      %749 = vmatprep.subr.bf16.mxu0 %v723
      %750 = vmatpush1.bf16.msra.mxu0 %v722
      %751 = vmatprep.subr.bf16.mxu0 %v726
      %752 = vmatpush1.bf16.msra.mxu0 %v725
      %753 = vmatprep.subr.bf16.mxu0 0
      %754 = vmatpush1.bf16.msra.mxu0 0
      %755 = vmatprep.subr.bf16.mxu0 0
      %756 = vmatpush1.bf16.msra.mxu0 0
      %757 = vmatprep.subr.bf16.mxu0 0
      %758 = vmatpush1.bf16.msra.mxu0 0
      %759 = vmatprep.subr.bf16.mxu0 0
      %760 = vmatpush1.bf16.msra.mxu0 0
      %761 = vmatprep.subr.bf16.mxu0 0
      %762 = vmatpush1.bf16.msra.mxu0 0
      %763 = vmatprep.subr.bf16.mxu0 0
      %764 = vmatpush1.bf16.msra.mxu0 0
      %765 = vmatprep.subr.bf16.mxu0 0
      %766 = vmatpush1.bf16.msra.mxu0 0
      %767 = vmatprep.subr.bf16.mxu0 0
      %768 = vmatpush1.bf16.msra.mxu0 0
      %769 = vmatprep.subr.bf16.mxu0 0
      %770 = vmatpush1.bf16.msra.mxu0 0
      %771 = vmatprep.subr.bf16.mxu0 0
      %772 = vmatpush1.bf16.msra.mxu0 0
      %773 = vmatprep.subr.bf16.mxu0 0
      %774 = vmatpush1.bf16.msra.mxu0 0
      %775 = vmatprep.subr.bf16.mxu0 0
      %776 = vmatpush1.bf16.msra.mxu0 0
      %777 = vmatprep.mubr.bf16.mxu0 0
      %778 = vmatmul.mubr.bf16.gmra.mrb[0].mxu0 %v740
      %v779 = vpop.f32.mrb[0].mxu0
      %v780 = vadd.f32 0.0, %v779
      %v781 = vpop.f32.mrb[0].mxu0
      %v782 = vadd.f32 0.0, %v781
      %v783 = vpop.f32.mrb[0].mxu0
      %v784 = vadd.f32 0.0, %v783
      %v785 = vpop.f32.mrb[0].mxu0
      %v786 = vadd.f32 0.0, %v785
      %787 = vmatprep.mubr.bf16.mxu0 0
      %788 = vmatmul.mubr.bf16.gmra.mrb[0].mxu0 %v743
      %v789 = vpop.f32.mrb[0].mxu0
      %v790 = vadd.f32 0.0, %v789
      %v791 = vpop.f32.mrb[0].mxu0
      %v792 = vadd.f32 0.0, %v791
      %v793 = vpop.f32.mrb[0].mxu0
      %v794 = vadd.f32 0.0, %v793
      %v795 = vpop.f32.mrb[0].mxu0
      %v796 = vadd.f32 0.0, %v795
      %797 = vdwg.mxu0
      %798 = vmatprep.subr.bf16.mxu0 0
      %799 = vmatpush1.bf16.msra.mxu0 %v718
      %800 = vmatprep.subr.bf16.mxu0 0
      %801 = vmatpush1.bf16.msra.mxu0 %v721
      %802 = vmatprep.subr.bf16.mxu0 0
      %803 = vmatpush1.bf16.msra.mxu0 %v724
      %804 = vmatprep.subr.bf16.mxu0 0
      %805 = vmatpush1.bf16.msra.mxu0 %v727
      %806 = vmatprep.subr.bf16.mxu0 0
      %807 = vmatpush1.bf16.msra.mxu0 0
      %808 = vmatprep.subr.bf16.mxu0 0
      %809 = vmatpush1.bf16.msra.mxu0 0
      %810 = vmatprep.subr.bf16.mxu0 0
      %811 = vmatpush1.bf16.msra.mxu0 0
      %812 = vmatprep.subr.bf16.mxu0 0
      %813 = vmatpush1.bf16.msra.mxu0 0
      %814 = vmatprep.subr.bf16.mxu0 0
      %815 = vmatpush1.bf16.msra.mxu0 0
      %816 = vmatprep.subr.bf16.mxu0 0
      %817 = vmatpush1.bf16.msra.mxu0 0
      %818 = vmatprep.subr.bf16.mxu0 0
      %819 = vmatpush1.bf16.msra.mxu0 0
      %820 = vmatprep.subr.bf16.mxu0 0
      %821 = vmatpush1.bf16.msra.mxu0 0
      %822 = vmatprep.subr.bf16.mxu0 0
      %823 = vmatpush1.bf16.msra.mxu0 0
      %824 = vmatprep.subr.bf16.mxu0 0
      %825 = vmatpush1.bf16.msra.mxu0 0
      %826 = vmatprep.subr.bf16.mxu0 0
      %827 = vmatpush1.bf16.msra.mxu0 0
      %828 = vmatprep.subr.bf16.mxu0 0
      %829 = vmatpush1.bf16.msra.mxu0 0
      %830 = vmatprep.mubr.bf16.mxu0 0
      %831 = vmatmul.mubr.bf16.gmra.mrb[0].mxu0 %v740
      %v832 = vpop.f32.mrb[0].mxu0
      %v833 = vadd.f32 0.0, %v832
      %v834 = vpop.f32.mrb[0].mxu0
      %v835 = vpop.f32.mrb[0].mxu0
      %v836 = vadd.f32 0.0, %v835
      %v837 = vpop.f32.mrb[0].mxu0
      %838 = vmatprep.mubr.bf16.mxu0 0
      %839 = vmatmul.mubr.bf16.gmra.mrb[0].mxu0 %v743
      %v840 = vpop.f32.mrb[0].mxu0
      %v841 = vadd.f32 0.0, %v840
      %v842 = vpop.f32.mrb[0].mxu0
      %v843 = vpop.f32.mrb[0].mxu0
      %v844 = vadd.f32 0.0, %v843
      %v845 = vpop.f32.mrb[0].mxu0
      %846 = vdwg.mxu0
      %v848 = vlaneseq
      %v849 = vshrl.u32 %v848, 7
      %v850 = vsub.s32 0, %v849
      %v851 = vrot.slane %v687, %v850
      %v852 = vlaneseq
      %v853 = vshrl.u32 %v852, 7
      %v854 = vsub.s32 1, %v853
      %v855 = vrot.slane %v687, %v854
      %v856 = vlaneseq
      %v857 = vshrl.u32 %v856, 7
      %v858 = vsub.s32 2, %v857
      %v859 = vrot.slane %v687, %v858
      %v863 = vmul.f32 %v780, %v851
      %v864 = vmul.f32 %v782, %v855
      %v865 = vmul.f32 %v833, %v859
      %v866 = vmul.f32 %v784, %v851
      %v867 = vmul.f32 %v786, %v855
      %v868 = vmul.f32 %v836, %v859
      %v869 = vmul.f32 %v790, %v851
      %v870 = vmul.f32 %v792, %v855
      %v871 = vmul.f32 %v841, %v859
      %v872 = vmul.f32 %v794, %v851
      %v873 = vmul.f32 %v796, %v855
      %v874 = vmul.f32 %v844, %v859
      %v875 = vpack.c.bf16 %v866, %v863
      %v876 = vpack.c.bf16 %v867, %v864
      %v877 = vpack.c.bf16 %v868, %v865
      %v878 = vpack.c.bf16 %v872, %v869
      %v879 = vpack.c.bf16 %v873, %v870
      %v880 = vpack.c.bf16 %v874, %v871
      %881 = vst [vmem:[%s228] sm:$0xff] %v863
      %882 = vst [vmem:[%s228 + $0x8] sm:$0xff] %v864
      %883 = vst [vmem:[%s228 + $0x10] sm:$0xff] %v865
      %884 = vst [vmem:[%s228 + $0x18] sm:$0xff] %v866
      %885 = vst [vmem:[%s228 + $0x20] sm:$0xff] %v867
      %886 = vst [vmem:[%s228 + $0x28] sm:$0xff] %v868
      %887 = vst [vmem:[%s228 + $0x30] sm:$0xff] %v869
      %888 = vst [vmem:[%s228 + $0x38] sm:$0xff] %v870
      %889 = vst [vmem:[%s228 + $0x40] sm:$0xff] %v871
      %890 = vst [vmem:[%s228 + $0x48] sm:$0xff] %v872
      %891 = vst [vmem:[%s228 + $0x50] sm:$0xff] %v873
      %892 = vst [vmem:[%s228 + $0x58] sm:$0xff] %v874
      %893 = vst [vmem:[#allocation3] sm:$0xff] 0
      %894 = vst [vmem:[#allocation3 + $0x28] sm:$0xff] 0
      %895 = vst [vmem:[#allocation3 + $0x20] sm:$0xff] 0
      %896 = vst [vmem:[#allocation3 + $0x48] sm:$0xff] 0
      %897 = vst [vmem:[#allocation3 + $0x8] sm:$0xff] %v875
      %898 = vst [vmem:[#allocation3 + $0x10] sm:$0xff] %v876
      %899 = vst [vmem:[#allocation3 + $0x18] sm:$0xff] %v877
      %900 = vst [vmem:[#allocation3 + $0x30] sm:$0xff] %v878
      %901 = vst [vmem:[#allocation3 + $0x38] sm:$0xff] %v879
      %902 = vst [vmem:[#allocation3 + $0x40] sm:$0xff] %v880
      %v903 = vld [vmem:[%s2] sm:$0xf]
      %v904 = vld [vmem:[%s2 + $0x4] sm:$0xf]
      %v905 = vld [vmem:[%s2 + $0x8] sm:$0xf]
      %v906 = vld [vmem:[%s2 + $0xc] sm:$0xf]
      %v907 = vld [vmem:[%s2 + $0x10] sm:$0xf]
      %v908 = vld [vmem:[%s2 + $0x14] sm:$0xf]
      %v909 = vld [vmem:[%s2 + $0x18] sm:$0xf]
      %v910 = vld [vmem:[%s2 + $0x1c] sm:$0xf]
      %v911 = vld [vmem:[#allocation3] sm:$0xff]
      %v912 = vld [vmem:[#allocation3 + $0x8] sm:$0xff]
      %v913 = vld [vmem:[#allocation3 + $0x10] sm:$0xff]
      %v914 = vld [vmem:[#allocation3 + $0x18] sm:$0xff]
      %v915 = vld [vmem:[#allocation3 + $0x20] sm:$0xff]
      %v916 = vld [vmem:[#allocation3 + $0x28] sm:$0xff]
      %v917 = vld [vmem:[#allocation3 + $0x30] sm:$0xff]
      %v918 = vld [vmem:[#allocation3 + $0x38] sm:$0xff]
      %v919 = vld [vmem:[#allocation3 + $0x40] sm:$0xff]
      %v920 = vld [vmem:[#allocation3 + $0x48] sm:$0xff]
      %v929 = vunpack.c.l.b16 %v903
      %v930 = vunpack.c.l.b16 %v904
      %v931 = vunpack.c.l.b16 %v905
      %v932 = vunpack.c.l.b16 %v906
      %v933 = vunpack.c.l.b16 %v907
      %v934 = vunpack.c.l.b16 %v908
      %v935 = vunpack.c.l.b16 %v909
      %v936 = vunpack.c.l.b16 %v910
      %v937 = vpack.c.b16 %v930, %v929
      %v938 = vpack.c.b16 %v932, %v931
      %v939 = vpack.c.b16 %v934, %v933
      %v940 = vpack.c.b16 %v936, %v935
      %v942 = vsel %vm494, %v937, 0
      %v945 = vsel %vm494, %v938, 0
      %v948 = vsel %vm494, %v939, 0
      %v951 = vsel %vm494, %v940, 0
      %953 = vmatprep.subr.bf16.mxu0 %v912
      %954 = vmatpush1.bf16.msra.mxu0 %v911
      %955 = vmatprep.subr.bf16.mxu0 %v917
      %956 = vmatpush1.bf16.msra.mxu0 %v916
      %957 = vmatprep.subr.bf16.mxu0 0
      %958 = vmatpush1.bf16.msra.mxu0 0
      %959 = vmatprep.subr.bf16.mxu0 0
      %960 = vmatpush1.bf16.msra.mxu0 0
      %961 = vmatprep.subr.bf16.mxu0 0
      %962 = vmatpush1.bf16.msra.mxu0 0
      %963 = vmatprep.subr.bf16.mxu0 0
      %964 = vmatpush1.bf16.msra.mxu0 0
      %965 = vmatprep.subr.bf16.mxu0 0
      %966 = vmatpush1.bf16.msra.mxu0 0
      %967 = vmatprep.subr.bf16.mxu0 0
      %968 = vmatpush1.bf16.msra.mxu0 0
      %969 = vmatprep.subr.bf16.mxu0 0
      %970 = vmatpush1.bf16.msra.mxu0 0
      %971 = vmatprep.subr.bf16.mxu0 0
      %972 = vmatpush1.bf16.msra.mxu0 0
      %973 = vmatprep.subr.bf16.mxu0 0
      %974 = vmatpush1.bf16.msra.mxu0 0
      %975 = vmatprep.subr.bf16.mxu0 0
      %976 = vmatpush1.bf16.msra.mxu0 0
      %977 = vmatprep.subr.bf16.mxu0 0
      %978 = vmatpush1.bf16.msra.mxu0 0
      %979 = vmatprep.subr.bf16.mxu0 0
      %980 = vmatpush1.bf16.msra.mxu0 0
      %981 = vmatprep.subr.bf16.mxu0 0
      %982 = vmatpush1.bf16.msra.mxu0 0
      %983 = vmatprep.subr.bf16.mxu0 0
      %984 = vmatpush1.bf16.msra.mxu0 0
      %985 = vmatprep.mubr.bf16.mxu0 0
      %986 = vmatmul.mubr.bf16.gmra.mrb[0].mxu0 %v942
      %v987 = vpop.f32.mrb[0].mxu0
      %v988 = vadd.f32 0.0, %v987
      %v989 = vpop.f32.mrb[0].mxu0
      %v990 = vadd.f32 0.0, %v989
      %v991 = vpop.f32.mrb[0].mxu0
      %v992 = vadd.f32 0.0, %v991
      %v993 = vpop.f32.mrb[0].mxu0
      %v994 = vadd.f32 0.0, %v993
      %995 = vmatprep.mubr.bf16.mxu0 0
      %996 = vmatmul.mubr.bf16.gmra.mrb[0].mxu0 %v945
      %v997 = vpop.f32.mrb[0].mxu0
      %v998 = vadd.f32 0.0, %v997
      %v999 = vpop.f32.mrb[0].mxu0
      %v1000 = vadd.f32 0.0, %v999
      %v1001 = vpop.f32.mrb[0].mxu0
      %v1002 = vadd.f32 0.0, %v1001
      %v1003 = vpop.f32.mrb[0].mxu0
      %v1004 = vadd.f32 0.0, %v1003
      %1005 = vmatprep.mubr.bf16.mxu0 0
      %1006 = vmatmul.mubr.bf16.gmra.mrb[0].mxu0 %v948
      %v1007 = vpop.f32.mrb[0].mxu0
      %v1008 = vadd.f32 0.0, %v1007
      %v1009 = vpop.f32.mrb[0].mxu0
      %v1010 = vadd.f32 0.0, %v1009
      %v1011 = vpop.f32.mrb[0].mxu0
      %v1012 = vadd.f32 0.0, %v1011
      %v1013 = vpop.f32.mrb[0].mxu0
      %v1014 = vadd.f32 0.0, %v1013
      %1015 = vmatprep.mubr.bf16.mxu0 0
      %1016 = vmatmul.mubr.bf16.gmra.mrb[0].mxu0 %v951
      %v1017 = vpop.f32.mrb[0].mxu0
      %v1018 = vadd.f32 0.0, %v1017
      %v1019 = vpop.f32.mrb[0].mxu0
      %v1020 = vadd.f32 0.0, %v1019
      %v1021 = vpop.f32.mrb[0].mxu0
      %v1022 = vadd.f32 0.0, %v1021
      %v1023 = vpop.f32.mrb[0].mxu0
      %v1024 = vadd.f32 0.0, %v1023
      %1025 = vdwg.mxu0
      %1026 = vmatprep.subr.bf16.mxu0 %v914
      %1027 = vmatpush1.bf16.msra.mxu0 %v913
      %1028 = vmatprep.subr.bf16.mxu0 %v919
      %1029 = vmatpush1.bf16.msra.mxu0 %v918
      %1030 = vmatprep.subr.bf16.mxu0 0
      %1031 = vmatpush1.bf16.msra.mxu0 0
      %1032 = vmatprep.subr.bf16.mxu0 0
      %1033 = vmatpush1.bf16.msra.mxu0 0
      %1034 = vmatprep.subr.bf16.mxu0 0
      %1035 = vmatpush1.bf16.msra.mxu0 0
      %1036 = vmatprep.subr.bf16.mxu0 0
      %1037 = vmatpush1.bf16.msra.mxu0 0
      %1038 = vmatprep.subr.bf16.mxu0 0
      %1039 = vmatpush1.bf16.msra.mxu0 0
      %1040 = vmatprep.subr.bf16.mxu0 0
      %1041 = vmatpush1.bf16.msra.mxu0 0
      %1042 = vmatprep.subr.bf16.mxu0 0
      %1043 = vmatpush1.bf16.msra.mxu0 0
      %1044 = vmatprep.subr.bf16.mxu0 0
      %1045 = vmatpush1.bf16.msra.mxu0 0
      %1046 = vmatprep.subr.bf16.mxu0 0
      %1047 = vmatpush1.bf16.msra.mxu0 0
      %1048 = vmatprep.subr.bf16.mxu0 0
      %1049 = vmatpush1.bf16.msra.mxu0 0
      %1050 = vmatprep.subr.bf16.mxu0 0
      %1051 = vmatpush1.bf16.msra.mxu0 0
      %1052 = vmatprep.subr.bf16.mxu0 0
      %1053 = vmatpush1.bf16.msra.mxu0 0
      %1054 = vmatprep.subr.bf16.mxu0 0
      %1055 = vmatpush1.bf16.msra.mxu0 0
      %1056 = vmatprep.subr.bf16.mxu0 0
      %1057 = vmatpush1.bf16.msra.mxu0 0
      %1058 = vmatprep.mubr.bf16.mxu0 0
      %1059 = vmatmul.mubr.bf16.gmra.mrb[0].mxu0 %v942
      %v1060 = vpop.f32.mrb[0].mxu0
      %v1061 = vadd.f32 0.0, %v1060
      %v1062 = vpop.f32.mrb[0].mxu0
      %v1063 = vadd.f32 0.0, %v1062
      %v1064 = vpop.f32.mrb[0].mxu0
      %v1065 = vadd.f32 0.0, %v1064
      %v1066 = vpop.f32.mrb[0].mxu0
      %v1067 = vadd.f32 0.0, %v1066
      %1068 = vmatprep.mubr.bf16.mxu0 0
      %1069 = vmatmul.mubr.bf16.gmra.mrb[0].mxu0 %v945
      %v1070 = vpop.f32.mrb[0].mxu0
      %v1071 = vadd.f32 0.0, %v1070
      %v1072 = vpop.f32.mrb[0].mxu0
      %v1073 = vadd.f32 0.0, %v1072
      %v1074 = vpop.f32.mrb[0].mxu0
      %v1075 = vadd.f32 0.0, %v1074
      %v1076 = vpop.f32.mrb[0].mxu0
      %v1077 = vadd.f32 0.0, %v1076
      %1078 = vmatprep.mubr.bf16.mxu0 0
      %1079 = vmatmul.mubr.bf16.gmra.mrb[0].mxu0 %v948
      %v1080 = vpop.f32.mrb[0].mxu0
      %v1081 = vadd.f32 0.0, %v1080
      %v1082 = vpop.f32.mrb[0].mxu0
      %v1083 = vadd.f32 0.0, %v1082
      %v1084 = vpop.f32.mrb[0].mxu0
      %v1085 = vadd.f32 0.0, %v1084
      %v1086 = vpop.f32.mrb[0].mxu0
      %v1087 = vadd.f32 0.0, %v1086
      %1088 = vmatprep.mubr.bf16.mxu0 0
      %1089 = vmatmul.mubr.bf16.gmra.mrb[0].mxu0 %v951
      %v1090 = vpop.f32.mrb[0].mxu0
      %v1091 = vadd.f32 0.0, %v1090
      %v1092 = vpop.f32.mrb[0].mxu0
      %v1093 = vadd.f32 0.0, %v1092
      %v1094 = vpop.f32.mrb[0].mxu0
      %v1095 = vadd.f32 0.0, %v1094
      %v1096 = vpop.f32.mrb[0].mxu0
      %v1097 = vadd.f32 0.0, %v1096
      %1098 = vdwg.mxu0
      %1099 = vmatprep.subr.bf16.mxu0 0
      %1100 = vmatpush1.bf16.msra.mxu0 %v915
      %1101 = vmatprep.subr.bf16.mxu0 0
      %1102 = vmatpush1.bf16.msra.mxu0 %v920
      %1103 = vmatprep.subr.bf16.mxu0 0
      %1104 = vmatpush1.bf16.msra.mxu0 0
      %1105 = vmatprep.subr.bf16.mxu0 0
      %1106 = vmatpush1.bf16.msra.mxu0 0
      %1107 = vmatprep.subr.bf16.mxu0 0
      %1108 = vmatpush1.bf16.msra.mxu0 0
      %1109 = vmatprep.subr.bf16.mxu0 0
      %1110 = vmatpush1.bf16.msra.mxu0 0
      %1111 = vmatprep.subr.bf16.mxu0 0
      %1112 = vmatpush1.bf16.msra.mxu0 0
      %1113 = vmatprep.subr.bf16.mxu0 0
      %1114 = vmatpush1.bf16.msra.mxu0 0
      %1115 = vmatprep.subr.bf16.mxu0 0
      %1116 = vmatpush1.bf16.msra.mxu0 0
      %1117 = vmatprep.subr.bf16.mxu0 0
      %1118 = vmatpush1.bf16.msra.mxu0 0
      %1119 = vmatprep.subr.bf16.mxu0 0
      %1120 = vmatpush1.bf16.msra.mxu0 0
      %1121 = vmatprep.subr.bf16.mxu0 0
      %1122 = vmatpush1.bf16.msra.mxu0 0
      %1123 = vmatprep.subr.bf16.mxu0 0
      %1124 = vmatpush1.bf16.msra.mxu0 0
      %1125 = vmatprep.subr.bf16.mxu0 0
      %1126 = vmatpush1.bf16.msra.mxu0 0
      %1127 = vmatprep.subr.bf16.mxu0 0
      %1128 = vmatpush1.bf16.msra.mxu0 0
      %1129 = vmatprep.subr.bf16.mxu0 0
      %1130 = vmatpush1.bf16.msra.mxu0 0
      %1131 = vmatprep.mubr.bf16.mxu0 0
      %1132 = vmatmul.mubr.bf16.gmra.mrb[0].mxu0 %v942
      %v1133 = vpop.f32.mrb[0].mxu0
      %v1134 = vadd.f32 0.0, %v1133
      %v1135 = vpop.f32.mrb[0].mxu0
      %v1136 = vpop.f32.mrb[0].mxu0
      %v1137 = vadd.f32 0.0, %v1136
      %v1138 = vpop.f32.mrb[0].mxu0
      %1139 = vmatprep.mubr.bf16.mxu0 0
      %1140 = vmatmul.mubr.bf16.gmra.mrb[0].mxu0 %v945
      %v1141 = vpop.f32.mrb[0].mxu0
      %v1142 = vadd.f32 0.0, %v1141
      %v1143 = vpop.f32.mrb[0].mxu0
      %v1144 = vpop.f32.mrb[0].mxu0
      %v1145 = vadd.f32 0.0, %v1144
      %v1146 = vpop.f32.mrb[0].mxu0
      %1147 = vmatprep.mubr.bf16.mxu0 0
      %1148 = vmatmul.mubr.bf16.gmra.mrb[0].mxu0 %v948
      %v1149 = vpop.f32.mrb[0].mxu0
      %v1150 = vadd.f32 0.0, %v1149
      %v1151 = vpop.f32.mrb[0].mxu0
      %v1152 = vpop.f32.mrb[0].mxu0
      %v1153 = vadd.f32 0.0, %v1152
      %v1154 = vpop.f32.mrb[0].mxu0
      %1155 = vmatprep.mubr.bf16.mxu0 0
      %1156 = vmatmul.mubr.bf16.gmra.mrb[0].mxu0 %v951
      %v1157 = vpop.f32.mrb[0].mxu0
      %v1158 = vadd.f32 0.0, %v1157
      %v1159 = vpop.f32.mrb[0].mxu0
      %v1160 = vpop.f32.mrb[0].mxu0
      %v1161 = vadd.f32 0.0, %v1160
      %v1162 = vpop.f32.mrb[0].mxu0
      %1163 = vdwg.mxu0
      %1164 = vst [vmem:[#allocation4] sm:$0xff] %v988
      %1165 = vst [vmem:[#allocation4 + $0x8] sm:$0xff] %v990
      %1166 = vst [vmem:[#allocation4 + $0x10] sm:$0xff] %v1061
      %1167 = vst [vmem:[#allocation4 + $0x18] sm:$0xff] %v1063
      %1168 = vst [vmem:[#allocation4 + $0x20] sm:$0xff] %v1134
      %1169 = vst [vmem:[#allocation4 + $0x28] sm:$0xff] %v992
      %1170 = vst [vmem:[#allocation4 + $0x30] sm:$0xff] %v994
      %1171 = vst [vmem:[#allocation4 + $0x38] sm:$0xff] %v1065
      %1172 = vst [vmem:[#allocation4 + $0x40] sm:$0xff] %v1067
      %1173 = vst [vmem:[#allocation4 + $0x48] sm:$0xff] %v1137
      %1174 = vst [vmem:[#allocation4 + $0x50] sm:$0xff] %v998
      %1175 = vst [vmem:[#allocation4 + $0x58] sm:$0xff] %v1000
      %1176 = vst [vmem:[#allocation4 + $0x60] sm:$0xff] %v1071
      %1177 = vst [vmem:[#allocation4 + $0x68] sm:$0xff] %v1073
      %1178 = vst [vmem:[#allocation4 + $0x70] sm:$0xff] %v1142
      %1179 = vst [vmem:[#allocation4 + $0x78] sm:$0xff] %v1002
      %1180 = vst [vmem:[#allocation4 + $0x80] sm:$0xff] %v1004
      %1181 = vst [vmem:[#allocation4 + $0x88] sm:$0xff] %v1075
      %1182 = vst [vmem:[#allocation4 + $0x90] sm:$0xff] %v1077
      %1183 = vst [vmem:[#allocation4 + $0x98] sm:$0xff] %v1145
      %1184 = vst [vmem:[#allocation4 + $0xa0] sm:$0xff] %v1008
      %1185 = vst [vmem:[#allocation4 + $0xa8] sm:$0xff] %v1010
      %1186 = vst [vmem:[#allocation4 + $0xb0] sm:$0xff] %v1081
      %1187 = vst [vmem:[#allocation4 + $0xb8] sm:$0xff] %v1083
      %1188 = vst [vmem:[#allocation4 + $0xc0] sm:$0xff] %v1150
      %1189 = vst [vmem:[#allocation4 + $0xc8] sm:$0xff] %v1012
      %1190 = vst [vmem:[#allocation4 + $0xd0] sm:$0xff] %v1014
      %1191 = vst [vmem:[#allocation4 + $0xd8] sm:$0xff] %v1085
      %1192 = vst [vmem:[#allocation4 + $0xe0] sm:$0xff] %v1087
      %1193 = vst [vmem:[#allocation4 + $0xe8] sm:$0xff] %v1153
      %1194 = vst [vmem:[#allocation4 + $0xf0] sm:$0xff] %v1018
      %1195 = vst [vmem:[#allocation4 + $0xf8] sm:$0xff] %v1020
      %1196 = vst [vmem:[#allocation4 + $0x100] sm:$0xff] %v1091
      %1197 = vst [vmem:[#allocation4 + $0x108] sm:$0xff] %v1093
      %1198 = vst [vmem:[#allocation4 + $0x110] sm:$0xff] %v1158
      %1199 = vst [vmem:[#allocation4 + $0x118] sm:$0xff] %v1022
      %1200 = vst [vmem:[#allocation4 + $0x120] sm:$0xff] %v1024
      %1201 = vst [vmem:[#allocation4 + $0x128] sm:$0xff] %v1095
      %1202 = vst [vmem:[#allocation4 + $0x130] sm:$0xff] %v1097
      %1203 = vst [vmem:[#allocation4 + $0x138] sm:$0xff] %v1161
      %v1204 = vld [vmem:[#allocation4] ss:$8 sm:$0xf]
      %s1205 = scalar_lea.vmem [#allocation4], 1
      %v1206 = vld [vmem:[%s1205] ss:$8 sm:$0xf]
      %s1207 = scalar_lea.vmem [#allocation4], 2
      %v1208 = vld [vmem:[%s1207] ss:$8 sm:$0xf]
      %s1209 = scalar_lea.vmem [#allocation4], 3
      %v1210 = vld [vmem:[%s1209] ss:$8 sm:$0xf]
      %s1211 = scalar_lea.vmem [#allocation4], 4
      %v1212 = vld [vmem:[%s1211] ss:$8 sm:$0xf]
      %s1213 = scalar_lea.vmem [#allocation4], 5
      %v1214 = vld [vmem:[%s1213] ss:$8 sm:$0xf]
      %s1215 = scalar_lea.vmem [#allocation4], 6
      %v1216 = vld [vmem:[%s1215] ss:$8 sm:$0xf]
      %s1217 = scalar_lea.vmem [#allocation4], 7
      %v1218 = vld [vmem:[%s1217] ss:$8 sm:$0xf]
      %1220 = vrot.lane.b32.xlu0 %v1206, 127
      %v1221 = vpop.permute.xlu0 %1220
      %v1222 = vrot.slane %v1221, 1
      %v1223 = vsel %vm251, %v1221, %v1222
      %v1225 = vadd.f32 %v1204, %v1223
      %1227 = vrot.lane.b32.xlu0 %v1210, 127
      %v1228 = vpop.permute.xlu0 %1227
      %v1229 = vrot.slane %v1228, 1
      %v1230 = vsel %vm251, %v1228, %v1229
      %v1232 = vadd.f32 %v1208, %v1230
      %1234 = vrot.lane.b32.xlu0 %v1214, 127
      %v1235 = vpop.permute.xlu0 %1234
      %v1236 = vrot.slane %v1235, 1
      %v1237 = vsel %vm251, %v1235, %v1236
      %v1239 = vadd.f32 %v1212, %v1237
      %1241 = vrot.lane.b32.xlu0 %v1218, 110
      %v1242 = vpop.permute.xlu0 %1241
      %v1243 = vrot.slane %v1242, 1
      %v1244 = vsel %vm641, %v1242, %v1243
      %v1246 = vadd.f32 %v1216, %v1244
      %1248 = vrot.lane.b32.xlu0 %v1232, 126
      %v1249 = vpop.permute.xlu0 %1248
      %v1250 = vrot.slane %v1249, 1
      %v1251 = vsel %vm260, %v1249, %v1250
      %v1253 = vadd.f32 %v1225, %v1251
      %1255 = vrot.lane.b32.xlu0 %v1246, 126
      %v1256 = vpop.permute.xlu0 %1255
      %v1257 = vrot.slane %v1256, 1
      %v1258 = vsel %vm260, %v1256, %v1257
      %v1260 = vadd.f32 %v1239, %v1258
      %1262 = vrot.lane.b32.xlu0 %v1260, 124
      %v1263 = vpop.permute.xlu0 %1262
      %v1264 = vrot.slane %v1263, 1
      %v1265 = vsel %vm278, %v1263, %v1264
      %v1267 = vadd.f32 %v1253, %v1265
      %s1268 = scalar_lea.vmem [#allocation4], 40
      %v1269 = vld [vmem:[%s1268] ss:$8 sm:$0xf]
      %s1270 = scalar_lea.vmem [#allocation4], 41
      %v1271 = vld [vmem:[%s1270] ss:$8 sm:$0xf]
      %s1272 = scalar_lea.vmem [#allocation4], 42
      %v1273 = vld [vmem:[%s1272] ss:$8 sm:$0xf]
      %s1274 = scalar_lea.vmem [#allocation4], 43
      %v1275 = vld [vmem:[%s1274] ss:$8 sm:$0xf]
      %s1276 = scalar_lea.vmem [#allocation4], 44
      %v1277 = vld [vmem:[%s1276] ss:$8 sm:$0xf]
      %s1278 = scalar_lea.vmem [#allocation4], 45
      %v1279 = vld [vmem:[%s1278] ss:$8 sm:$0xf]
      %s1280 = scalar_lea.vmem [#allocation4], 46
      %v1281 = vld [vmem:[%s1280] ss:$8 sm:$0xf]
      %s1282 = scalar_lea.vmem [#allocation4], 47
      %v1283 = vld [vmem:[%s1282] ss:$8 sm:$0xf]
      %1285 = vrot.lane.b32.xlu0 %v1271, 127
      %v1286 = vpop.permute.xlu0 %1285
      %v1287 = vrot.slane %v1286, 1
      %v1288 = vsel %vm251, %v1286, %v1287
      %v1290 = vadd.f32 %v1269, %v1288
      %1292 = vrot.lane.b32.xlu0 %v1275, 127
      %v1293 = vpop.permute.xlu0 %1292
      %v1294 = vrot.slane %v1293, 1
      %v1295 = vsel %vm251, %v1293, %v1294
      %v1297 = vadd.f32 %v1273, %v1295
      %1299 = vrot.lane.b32.xlu0 %v1279, 127
      %v1300 = vpop.permute.xlu0 %1299
      %v1301 = vrot.slane %v1300, 1
      %v1302 = vsel %vm251, %v1300, %v1301
      %v1304 = vadd.f32 %v1277, %v1302
      %1306 = vrot.lane.b32.xlu0 %v1283, 127
      %v1307 = vpop.permute.xlu0 %1306
      %v1308 = vrot.slane %v1307, 1
      %v1309 = vsel %vm251, %v1307, %v1308
      %v1311 = vadd.f32 %v1281, %v1309
      %1313 = vrot.lane.b32.xlu0 %v1297, 126
      %v1314 = vpop.permute.xlu0 %1313
      %v1315 = vrot.slane %v1314, 1
      %v1316 = vsel %vm260, %v1314, %v1315
      %v1318 = vadd.f32 %v1290, %v1316
      %1320 = vrot.lane.b32.xlu0 %v1311, 109
      %v1321 = vpop.permute.xlu0 %1320
      %v1322 = vrot.slane %v1321, 1
      %v1323 = vsel %vm651, %v1321, %v1322
      %v1325 = vadd.f32 %v1304, %v1323
      %1327 = vrot.lane.b32.xlu0 %v1325, 124
      %v1328 = vpop.permute.xlu0 %1327
      %v1329 = vrot.slane %v1328, 1
      %v1330 = vsel %vm278, %v1328, %v1329
      %v1332 = vadd.f32 %v1318, %v1330
      %1334 = vrot.lane.b32.xlu0 %v1332, 103
      %v1335 = vpop.permute.xlu0 %1334
      %v1336 = vrot.slane %v1335, 1
      %v1337 = vsel %vm314, %v1335, %v1336
      %v1339 = vadd.f32 %v1267, %v1337
      %s1340 = scalar_lea.vmem [#allocation4], 80
      %v1341 = vld [vmem:[%s1340] ss:$8 sm:$0xf]
      %s1342 = scalar_lea.vmem [#allocation4], 81
      %v1343 = vld [vmem:[%s1342] ss:$8 sm:$0xf]
      %s1344 = scalar_lea.vmem [#allocation4], 82
      %v1345 = vld [vmem:[%s1344] ss:$8 sm:$0xf]
      %s1346 = scalar_lea.vmem [#allocation4], 83
      %v1347 = vld [vmem:[%s1346] ss:$8 sm:$0xf]
      %s1348 = scalar_lea.vmem [#allocation4], 84
      %v1349 = vld [vmem:[%s1348] ss:$8 sm:$0xf]
      %s1350 = scalar_lea.vmem [#allocation4], 85
      %v1351 = vld [vmem:[%s1350] ss:$8 sm:$0xf]
      %s1352 = scalar_lea.vmem [#allocation4], 86
      %v1353 = vld [vmem:[%s1352] ss:$8 sm:$0xf]
      %s1354 = scalar_lea.vmem [#allocation4], 87
      %v1355 = vld [vmem:[%s1354] ss:$8 sm:$0xf]
      %1357 = vrot.lane.b32.xlu0 %v1343, 127
      %v1358 = vpop.permute.xlu0 %1357
      %v1359 = vrot.slane %v1358, 1
      %v1360 = vsel %vm251, %v1358, %v1359
      %v1362 = vadd.f32 %v1341, %v1360
      %1364 = vrot.lane.b32.xlu0 %v1347, 127
      %v1365 = vpop.permute.xlu0 %1364
      %v1366 = vrot.slane %v1365, 1
      %v1367 = vsel %vm251, %v1365, %v1366
      %v1369 = vadd.f32 %v1345, %v1367
      %1371 = vrot.lane.b32.xlu0 %v1351, 110
      %v1372 = vpop.permute.xlu0 %1371
      %v1373 = vrot.slane %v1372, 1
      %v1374 = vsel %vm641, %v1372, %v1373
      %v1376 = vadd.f32 %v1349, %v1374
      %1378 = vrot.lane.b32.xlu0 %v1355, 127
      %v1379 = vpop.permute.xlu0 %1378
      %v1380 = vrot.slane %v1379, 1
      %v1381 = vsel %vm251, %v1379, %v1380
      %v1383 = vadd.f32 %v1353, %v1381
      %1385 = vrot.lane.b32.xlu0 %v1369, 126
      %v1386 = vpop.permute.xlu0 %1385
      %v1387 = vrot.slane %v1386, 1
      %v1388 = vsel %vm260, %v1386, %v1387
      %v1390 = vadd.f32 %v1362, %v1388
      %1392 = vrot.lane.b32.xlu0 %v1383, 109
      %v1393 = vpop.permute.xlu0 %1392
      %v1394 = vrot.slane %v1393, 1
      %v1395 = vsel %vm651, %v1393, %v1394
      %v1397 = vadd.f32 %v1376, %v1395
      %1399 = vrot.lane.b32.xlu0 %v1397, 124
      %v1400 = vpop.permute.xlu0 %1399
      %v1401 = vrot.slane %v1400, 1
      %v1402 = vsel %vm278, %v1400, %v1401
      %v1404 = vadd.f32 %v1390, %v1402
      %1406 = vrot.lane.b32.xlu0 %v1404, 78
      %v1407 = vpop.permute.xlu0 %1406
      %v1408 = vrot.slane %v1407, 1
      %v1409 = vsel %vm386, %v1407, %v1408
      %v1411 = vadd.f32 %v1339, %v1409
      %s1412 = scalar_lea.vmem [#allocation4], 128
      %v1413 = vld [vmem:[%s1412] ss:$8 sm:$0x7]
      %s1414 = scalar_lea.vmem [#allocation4], 129
      %v1415 = vld [vmem:[%s1414] ss:$8 sm:$0xf]
      %s1416 = scalar_lea.vmem [#allocation4], 130
      %v1417 = vld [vmem:[%s1416] ss:$8 sm:$0xf]
      %s1418 = scalar_lea.vmem [#allocation4], 131
      %v1419 = vld [vmem:[%s1418] ss:$8 sm:$0xf]
      %s1420 = scalar_lea.vmem [#allocation4], 132
      %v1421 = vld [vmem:[%s1420] ss:$8 sm:$0xf]
      %s1422 = scalar_lea.vmem [#allocation4], 133
      %v1423 = vld [vmem:[%s1422] ss:$8 sm:$0xf]
      %s1424 = scalar_lea.vmem [#allocation4], 134
      %v1425 = vld [vmem:[%s1424] ss:$8 sm:$0xf]
      %s1426 = scalar_lea.vmem [#allocation4], 135
      %v1427 = vld [vmem:[%s1426] ss:$8 sm:$0xf]
      %1429 = vrot.lane.b32.xlu0 %v1415, 127
      %v1430 = vpop.permute.xlu0 %1429
      %v1431 = vrot.slane %v1430, 1
      %v1432 = vsel %vm251, %v1430, %v1431
      %v1434 = vadd.f32 %v1413, %v1432
      %1436 = vrot.lane.b32.xlu0 %v1419, 127
      %v1437 = vpop.permute.xlu0 %1436
      %v1438 = vrot.slane %v1437, 1
      %v1439 = vsel %vm251, %v1437, %v1438
      %v1441 = vadd.f32 %v1417, %v1439
      %1443 = vrot.lane.b32.xlu0 %v1423, 127
      %v1444 = vpop.permute.xlu0 %1443
      %v1445 = vrot.slane %v1444, 1
      %v1446 = vsel %vm251, %v1444, %v1445
      %v1448 = vadd.f32 %v1421, %v1446
      %1450 = vrot.lane.b32.xlu0 %v1427, 127
      %v1451 = vpop.permute.xlu0 %1450
      %v1452 = vrot.slane %v1451, 1
      %v1453 = vsel %vm251, %v1451, %v1452
      %v1455 = vadd.f32 %v1425, %v1453
      %1457 = vrot.lane.b32.xlu0 %v1441, 126
      %v1458 = vpop.permute.xlu0 %1457
      %v1459 = vrot.slane %v1458, 1
      %v1460 = vsel %vm260, %v1458, %v1459
      %v1462 = vadd.f32 %v1434, %v1460
      %1464 = vrot.lane.b32.xlu0 %v1455, 126
      %v1465 = vpop.permute.xlu0 %1464
      %v1466 = vrot.slane %v1465, 1
      %v1467 = vsel %vm260, %v1465, %v1466
      %v1469 = vadd.f32 %v1448, %v1467
      %1471 = vrot.lane.b32.xlu0 %v1469, 107
      %v1472 = vpop.permute.xlu0 %1471
      %v1473 = vrot.slane %v1472, 1
      %v1474 = vsel %vm671, %v1472, %v1473
      %v1476 = vadd.f32 %v1462, %v1474
      %1478 = vrot.lane.b32.xlu0 %v1476, 53
      %v1479 = vpop.permute.xlu0 %1478
      %v1480 = vrot.slane %v1479, 7
      %v1481 = vsel %vm458, %v1480, %v1479
      %v1483 = vadd.f32 %v1411, %v1481
      %s1484 = scalar_lea.vmem [#allocation4], 168
      %v1485 = vld [vmem:[%s1484] ss:$8 sm:$0xf]
      %s1486 = scalar_lea.vmem [#allocation4], 169
      %v1487 = vld [vmem:[%s1486] ss:$8 sm:$0xf]
      %s1488 = scalar_lea.vmem [#allocation4], 170
      %v1489 = vld [vmem:[%s1488] ss:$8 sm:$0xf]
      %s1490 = scalar_lea.vmem [#allocation4], 171
      %v1491 = vld [vmem:[%s1490] ss:$8 sm:$0xf]
      %s1492 = scalar_lea.vmem [#allocation4], 172
      %v1493 = vld [vmem:[%s1492] ss:$8 sm:$0xf]
      %s1494 = scalar_lea.vmem [#allocation4], 173
      %v1495 = vld [vmem:[%s1494] ss:$8 sm:$0xf]
      %s1496 = scalar_lea.vmem [#allocation4], 174
      %v1497 = vld [vmem:[%s1496] ss:$8 sm:$0xf]
      %s1498 = scalar_lea.vmem [#allocation4], 175
      %v1499 = vld [vmem:[%s1498] ss:$8 sm:$0xf]
      %1501 = vrot.lane.b32.xlu0 %v1487, 127
      %v1502 = vpop.permute.xlu0 %1501
      %v1503 = vrot.slane %v1502, 1
      %v1504 = vsel %vm251, %v1502, %v1503
      %v1506 = vadd.f32 %v1485, %v1504
      %1508 = vrot.lane.b32.xlu0 %v1491, 110
      %v1509 = vpop.permute.xlu0 %1508
      %v1510 = vrot.slane %v1509, 1
      %v1511 = vsel %vm641, %v1509, %v1510
      %v1513 = vadd.f32 %v1489, %v1511
      %1515 = vrot.lane.b32.xlu0 %v1495, 127
      %v1516 = vpop.permute.xlu0 %1515
      %v1517 = vrot.slane %v1516, 1
      %v1518 = vsel %vm251, %v1516, %v1517
      %v1520 = vadd.f32 %v1493, %v1518
      %1522 = vrot.lane.b32.xlu0 %v1499, 127
      %v1523 = vpop.permute.xlu0 %1522
      %v1524 = vrot.slane %v1523, 1
      %v1525 = vsel %vm251, %v1523, %v1524
      %v1527 = vadd.f32 %v1497, %v1525
      %1529 = vrot.lane.b32.xlu0 %v1513, 126
      %v1530 = vpop.permute.xlu0 %1529
      %v1531 = vrot.slane %v1530, 1
      %v1532 = vsel %vm260, %v1530, %v1531
      %v1534 = vadd.f32 %v1506, %v1532
      %1536 = vrot.lane.b32.xlu0 %v1527, 126
      %v1537 = vpop.permute.xlu0 %1536
      %v1538 = vrot.slane %v1537, 1
      %v1539 = vsel %vm260, %v1537, %v1538
      %v1541 = vadd.f32 %v1520, %v1539
      %1543 = vrot.lane.b32.xlu0 %v1541, 107
      %v1544 = vpop.permute.xlu0 %1543
      %v1545 = vrot.slane %v1544, 1
      %v1546 = vsel %vm671, %v1544, %v1545
      %v1548 = vadd.f32 %v1534, %v1546
      %1550 = vrot.lane.b32.xlu0 %v1548, 28
      %v1551 = vpop.permute.xlu0 %1550
      %v1552 = vrot.slane %v1551, 7
      %v1553 = vsel %vm530, %v1552, %v1551
      %v1555 = vadd.f32 %v1483, %v1553
      %s1556 = scalar_lea.vmem [#allocation4], 208
      %v1557 = vld [vmem:[%s1556] ss:$8 sm:$0xf]
      %s1558 = scalar_lea.vmem [#allocation4], 209
      %v1559 = vld [vmem:[%s1558] ss:$8 sm:$0xf]
      %s1560 = scalar_lea.vmem [#allocation4], 210
      %v1561 = vld [vmem:[%s1560] ss:$8 sm:$0xf]
      %s1562 = scalar_lea.vmem [#allocation4], 211
      %v1563 = vld [vmem:[%s1562] ss:$8 sm:$0xf]
      %s1564 = scalar_lea.vmem [#allocation4], 212
      %v1565 = vld [vmem:[%s1564] ss:$8 sm:$0xf]
      %s1566 = scalar_lea.vmem [#allocation4], 213
      %v1567 = vld [vmem:[%s1566] ss:$8 sm:$0xf]
      %s1568 = scalar_lea.vmem [#allocation4], 214
      %v1569 = vld [vmem:[%s1568] ss:$8 sm:$0xf]
      %s1570 = scalar_lea.vmem [#allocation4], 215
      %v1571 = vld [vmem:[%s1570] ss:$8 sm:$0xf]
      %1573 = vrot.lane.b32.xlu0 %v1559, 127
      %v1574 = vpop.permute.xlu0 %1573
      %v1575 = vrot.slane %v1574, 1
      %v1576 = vsel %vm251, %v1574, %v1575
      %v1578 = vadd.f32 %v1557, %v1576
      %1580 = vrot.lane.b32.xlu0 %v1563, 127
      %v1581 = vpop.permute.xlu0 %1580
      %v1582 = vrot.slane %v1581, 1
      %v1583 = vsel %vm251, %v1581, %v1582
      %v1585 = vadd.f32 %v1561, %v1583
      %1587 = vrot.lane.b32.xlu0 %v1567, 127
      %v1588 = vpop.permute.xlu0 %1587
      %v1589 = vrot.slane %v1588, 1
      %v1590 = vsel %vm251, %v1588, %v1589
      %v1592 = vadd.f32 %v1565, %v1590
      %1594 = vrot.lane.b32.xlu0 %v1571, 127
      %v1595 = vpop.permute.xlu0 %1594
      %v1596 = vrot.slane %v1595, 1
      %v1597 = vsel %vm251, %v1595, %v1596
      %v1599 = vadd.f32 %v1569, %v1597
      %1601 = vrot.lane.b32.xlu0 %v1585, 109
      %v1602 = vpop.permute.xlu0 %1601
      %v1603 = vrot.slane %v1602, 1
      %v1604 = vsel %vm651, %v1602, %v1603
      %v1606 = vadd.f32 %v1578, %v1604
      %1608 = vrot.lane.b32.xlu0 %v1599, 126
      %v1609 = vpop.permute.xlu0 %1608
      %v1610 = vrot.slane %v1609, 1
      %v1611 = vsel %vm260, %v1609, %v1610
      %v1613 = vadd.f32 %v1592, %v1611
      %1615 = vrot.lane.b32.xlu0 %v1613, 107
      %v1616 = vpop.permute.xlu0 %1615
      %v1617 = vrot.slane %v1616, 1
      %v1618 = vsel %vm671, %v1616, %v1617
      %v1620 = vadd.f32 %v1606, %v1618
      %1622 = vrot.lane.b32.xlu0 %v1620, 3
      %v1623 = vpop.permute.xlu0 %1622
      %v1624 = vrot.slane %v1623, 7
      %v1625 = vsel %vm602, %v1624, %v1623
      %v1627 = vadd.f32 %v1555, %v1625
      %s1628 = scalar_lea.vmem [#allocation4], 248
      %v1629 = vld [vmem:[%s1628] ss:$8 sm:$0xf]
      %1631 = vrot.lane.b32.xlu0 %v1629, 106
      %v1632 = vpop.permute.xlu0 %1631
      %v1633 = vrot.slane %v1632, 1
      %v1634 = vsel %vm681, %v1632, %v1633
      %v1636 = vadd.f32 %v1627, %v1634
      %1637 = vrot.lane.b32.xlu0 %v687, 53
      %v1638 = vpop.permute.xlu0 %1637
      %v1639 = vrot.slane %v1638, 7
      %v1640 = vsel %vm458, %v1639, %v1638
      %v1642 = vmul.f32 %v1636, %v1640
      %1644 = vrot.lane.b32.xlu0 %v1642, 75
      %v1645 = vpop.permute.xlu0 %1644
      %v1646 = vrot.slane %v1645, 1
      %v1647 = vsel %vm413, %v1645, %v1646
      %1649 = vst.msk [vmem:[%s232] sm:$0x7] %vm244, %v1647
      %p1650 = scmp.lt.s32.totalorder %s17, 1
      %s1651 = scalar_select %p1650, %s17, 1
      %s1652 = smul.addr %s1651, 12
      %s1653 = smul.addr %s1652, 8
      %s1654 = scalar_lea.vmem %s4, %s1653
      %p1655 = scmp.lt.s32.totalorder %s17, 1
      %s1656 = scalar_select %p1655, %s17, 1
      %s1657 = smul.addr %s1656, 3
      %s1658 = scalar_lea.vmem %s5, %s1657
      // Predicated region
      $region37: #{zpzp_forward.1} parent=35 // pred_check
        %p1659 = pneg %p124
      $region38: #{zpzp_forward.1} parent=35 // pred_check_branch
        %1661 = sbr.rel (%p1659) target = $region40
      $region39: #{zpzp_forward.1} parent=35 // pred_region
        _
      $region40: #{zpzp_forward.1} parent=35 // pred_fallthru
        _
      // Predicated region
      $region41: #{zpzp_forward.1} parent=35 // pred_check
        %p1662 = pneg %p150
      $region42: #{zpzp_forward.1} parent=35 // pred_check_branch
        %1664 = sbr.rel (%p1662) target = $region44
      $region43: #{zpzp_forward.1} parent=35 // pred_region
        _
      $region44: #{zpzp_forward.1} parent=35 // pred_fallthru
        _
    $region36: #{zpzp_forward.1} parent=5 // pred_fallthru
      _
    %p1665 = scmp.le.s32.totalorder 2, %s12
    // Predicated region
    $region45: #{zpzp_forward.1} parent=5 // pred_check
      %p1666 = pneg %p1665
    $region46: #{zpzp_forward.1} parent=5 // pred_check_branch
      %1668 = sbr.rel (%p1666) target = $region48
    $region47: #{zpzp_forward.1} parent=5 // pred_region
      %s1669 = ssub.s32 %s12, 2
      // Predicated region
      $region49: #{zpzp_forward.1} parent=47 // pred_check
        %p1670 = pneg %p130
      $region50: #{zpzp_forward.1} parent=47 // pred_check_branch
        %1672 = sbr.rel (%p1670) target = $region52
      $region51: #{zpzp_forward.1} parent=47 // pred_region
        %p1673 = scmp.lt.s32.totalorder %s18, 1
        %s1674 = scalar_select %p1673, %s18, 1
        %s1675 = smul.addr %s1674, 12
        %s1676 = smul.addr %s1675, 8
        %s1677 = scalar_lea.vmem %s4, %s1676
      $region52: #{zpzp_forward.1} parent=47 // pred_fallthru
        _
      // Predicated region
      $region53: #{zpzp_forward.1} parent=47 // pred_check
        %p1678 = pneg %p156
      $region54: #{zpzp_forward.1} parent=47 // pred_check_branch
        %1680 = sbr.rel (%p1678) target = $region56
      $region55: #{zpzp_forward.1} parent=47 // pred_region
        %p1681 = scmp.lt.s32.totalorder %s18, 1
        %s1682 = scalar_select %p1681, %s18, 1
        %s1683 = smul.addr %s1682, 3
        %s1684 = scalar_lea.vmem %s5, %s1683
      $region56: #{zpzp_forward.1} parent=47 // pred_fallthru
        _
    $region48: #{zpzp_forward.1} parent=5 // pred_fallthru
      _
  $region6: #{zpzp_forward.1} parent=0 // loop_footer
    %s16 = sadd.s32 1, %s12
  $region7: #{zpzp_forward.1} parent=0 // loop_footer_branch
    %11 = sbr.rel target = $region3
  $region8: #{zpzp_forward.1} parent=0 // loop_exit
    _

</llo_original>
